<compile_context>
chip_gen: v7x
topology: tpu7x:2x2x1
jax: 0.10.0
libtpu: 0.0.40
codegen_flags: <defaults>
</compile_context>

<pallas_src>
import functools

import jax
import jax.numpy as jnp
from jax import lax
from jax.experimental import pallas as pl
from jax.experimental.pallas import tpu as pltpu


def _round_half_even(x):
    """Round-half-to-even (matches torch.round / jnp.round) from primitives
    that are guaranteed to lower in Mosaic (floor / compare / select)."""
    f = jnp.floor(x)
    frac = x - f
    f_is_odd = (f - 2.0 * jnp.floor(f * 0.5)) > 0.5
    round_up = (frac > 0.5) | ((frac == 0.5) & f_is_odd)
    return f + jnp.where(round_up, 1.0, 0.0)


def _duration_predictor_kernel(x_ref, *refs, num_layers, kernel_size, seq_len,
                               batch_block, eval_mode, ln_eps):
    # refs layout: [w_i, b_i, gamma_i, beta_i] * num_layers, w_lin, b_lin, out_ref
    n_layer_refs = 4 * num_layers
    layer_refs = refs[:n_layer_refs]
    wl_ref, bl_ref, out_ref = refs[n_layer_refs:]

    K = kernel_size
    p = (K - 1) // 2
    T = seq_len
    Bb = batch_block
    M = Bb * T                                    # flattened rows in this block

    # Boundary masks for the shifted conv taps, shared by all layers.
    # roll(h, s) wraps rows across batch-item boundaries (and around the block),
    # so rows whose source index left the current item are zeroed.
    row = lax.broadcasted_iota(jnp.int32, (M, 1), 0)

    def _valid_mask(s):
        invalid = None
        for b in range(Bb):                       # Bb is a static Python int
            if s > 0:
                c = (row >= b * T) & (row < b * T + s)
            else:
                c = (row >= (b + 1) * T + s) & (row < (b + 1) * T)
            invalid = c if invalid is None else (invalid | c)
        return jnp.logical_not(invalid)

    shift_masks = {}
    for k in range(K):
        s = p - k
        if s != 0 and s not in shift_masks:
            shift_masks[s] = _valid_mask(s)

    h = x_ref[...].astype(jnp.float32)            # (M, C_in) working copy (f32)

    for li in range(num_layers):
        w_ref, b_ref, g_ref, be_ref = layer_refs[4 * li: 4 * li + 4]
        c_out = w_ref.shape[2]
        mm_dtype = w_ref.dtype                    # bf16 matmul operands

        # Conv1d (cross-correlation) as K shifted MXU matmuls with f32 accum:
        #   out[t, co] = sum_k h[t + k - p, :] @ W[k][:, co]
        acc = None
        for k in range(K):
            s = p - k
            if s == 0:
                operand = h
            else:
                shifted = pltpu.roll(h, shift=s % M, axis=0)   # XLU sublane roll
                operand = jnp.where(shift_masks[s], shifted, 0.0)
            term = jnp.dot(operand.astype(mm_dtype), w_ref[k],
                           preferred_element_type=jnp.float32)
            acc = term if acc is None else acc + term
        acc = acc + b_ref[...]                    # (M, C_out)

        # ReLU (VPU)
        acc = jnp.maximum(acc, 0.0)

        # LayerNorm over channels (lane axis), single-pass statistics.
        inv_c = 1.0 / c_out
        mean = jnp.sum(acc, axis=-1, keepdims=True) * inv_c
        ex2 = jnp.sum(acc * acc, axis=-1, keepdims=True) * inv_c
        var = jnp.maximum(ex2 - mean * mean, 0.0)
        h = (acc - mean) * lax.rsqrt(var + ln_eps) * g_ref[...] + be_ref[...]
        # TODO(synk): nn.Dropout omitted — identity in eval mode; training-mode
        # stochastic dropout is not implemented.

    # Final Linear(C -> 1), computed as a transposed contraction so the result
    # lands with time on the lane axis (lane-dense store):
    #   y[0, m] = sum_c wl[0, c] * h[m, c] + bias
    y = jnp.einsum("xc,mc->xm", wl_ref[...], h,
                   preferred_element_type=jnp.float32)          # (1, M)
    y = y + bl_ref[...]

    if eval_mode:
        d = jnp.exp(y) - 1.0                          # log_domain_offset = 1.0
        d = _round_half_even(d)                       # torch.round semantics
        # clamp(., min=0) and guard the int32 cast against exp() overflow.
        d = jnp.clip(d, 0.0, 2147483520.0)
        out_ref[0] = d.astype(out_ref.dtype)          # .long() -> int32
    else:
        out_ref[0] = y.astype(out_ref.dtype)          # log-domain output


def _pick_batch_block(B, T, target_rows=256):
    """Largest batch block whose flattened row count (Bb*T) stays near the MXU
    height, subject to sublane alignment of the x block (Bb*T % 8 == 0 or the
    block covers the whole array) and to keeping >= 2 grid steps when B >= 2
    (so v7x's second TensorCore gets work)."""
    total = B * T
    cands = [bb for bb in range(1, B + 1)
             if B % bb == 0 and ((bb * T) % 8 == 0 or bb * T == total)]
    pref = [bb for bb in cands if bb * T <= target_rows and (B // bb >= 2 or B == 1)]
    if pref:
        return max(pref)
    fit = [bb for bb in cands if bb * T <= target_rows]
    if fit:
        return max(fit)
    return min(cands)


def fastspeech2_duration_predictor(x, conv_params, linear_weight, linear_bias, *,
                                   training=False, ln_eps=1e-5,
                                   batch_block=None,
                                   compute_dtype=jnp.bfloat16):
    """Pallas implementation of FastSpeech2ConformerDurationPredictor.forward.

    Args:
      x: (B, T, hidden_size) encoder hidden states.
      conv_params: list of per-layer tuples
          (conv_w (K, C_in, C_out), conv_b (C_out,), ln_gamma (C_out,), ln_beta (C_out,))
          where conv_w[k, ci, co] == torch_conv.weight[co, ci, k].
      linear_weight: (C_out,)  (== torch linear.weight[0])
      linear_bias: scalar       (== torch linear.bias[0])
      training: if False (eval), returns int32 durations; if True, returns
                log-domain float predictions (dropout omitted).
      batch_block: batch items folded into one grid step (must divide B).
      compute_dtype: dtype of x / conv weights fed to the MXU (bf16 default).
    Returns:
      (B, T) array — int32 durations (eval) or float32 log-domain values (training).
    """
    B, T, D = x.shape
    num_layers = len(conv_params)
    K = conv_params[0][0].shape[0]
    # TODO(synk): even kernel_size changes the output length in PyTorch Conv1d;
    # only the (default) odd duration_predictor_kernel_size case is supported.
    assert K % 2 == 1, "only odd duration_predictor_kernel_size supported"
    C = conv_params[0][0].shape[2]

    Bb = batch_block if batch_block is not None else _pick_batch_block(B, T)
    assert B % Bb == 0, "batch_block must divide the batch size"
    assert (Bb * T) % 8 == 0 or Bb == B, "batch_block*T must be sublane-aligned"
    G = B // Bb
    M = Bb * T

    # Flatten (B, T) -> B*T rows (free in XLA) so the kernel works on a big,
    # MXU-friendly (M, C) matmul M dimension; downcast for DMA/MXU.
    x_flat = x.reshape(B * T, D).astype(compute_dtype)

    inputs = [x_flat]
    in_specs = [pl.BlockSpec((M, D), lambda g: (g, 0))]
    for (w, b, gam, bet) in conv_params:
        kk, cin, cout = w.shape
        inputs += [
            w.astype(compute_dtype),                       # bf16 MXU operand
            b.reshape(1, cout).astype(jnp.float32),
            gam.reshape(1, cout).astype(jnp.float32),
            bet.reshape(1, cout).astype(jnp.float32),
        ]
        in_specs += [
            pl.BlockSpec((kk, cin, cout), lambda g: (0, 0, 0)),  # resident weights
            pl.BlockSpec((1, cout), lambda g: (0, 0)),
            pl.BlockSpec((1, cout), lambda g: (0, 0)),
            pl.BlockSpec((1, cout), lambda g: (0, 0)),
        ]
    inputs += [
        linear_weight.reshape(1, C).astype(jnp.float32),
        jnp.asarray(linear_bias, jnp.float32).reshape(1, 1),
    ]
    in_specs += [
        pl.BlockSpec((1, C), lambda g: (0, 0)),
        pl.BlockSpec((1, 1), lambda g: (0, 0)),
    ]

    out_dtype = jnp.int32 if not training else jnp.float32
    kernel = functools.partial(
        _duration_predictor_kernel,
        num_layers=num_layers,
        kernel_size=K,
        seq_len=T,
        batch_block=Bb,
        eval_mode=not training,
        ln_eps=ln_eps,
    )

    out = pl.pallas_call(
        kernel,
        # Lane-dense output: one contiguous (1, Bb*T) row per grid step.
        out_shape=jax.ShapeDtypeStruct((G, 1, M), out_dtype),
        grid=(G,),
        in_specs=in_specs,
        out_specs=pl.BlockSpec((1, 1, M), lambda g: (g, 0, 0)),
        compiler_params=pltpu.CompilerParams(
            dimension_semantics=("parallel",),  # grid steps independent (megacore on v7x)
        ),
    )(*inputs)
    return out.reshape(B, T)


def _reference(x, conv_params, linear_weight, linear_bias, *, training,
               ln_eps=1e-5, compute_dtype=jnp.bfloat16):
    """Pure-JAX reference mirroring the PyTorch module (dropout = identity),
    with inputs/conv-weights quantized to the kernel's MXU operand dtype."""
    f32 = jnp.float32
    h = x.astype(compute_dtype).astype(f32)
    _, T, _ = x.shape
    for (w, b, g, be) in conv_params:
        w = w.astype(compute_dtype).astype(f32)
        K = w.shape[0]
        p = (K - 1) // 2
        hp = jnp.pad(h, ((0, 0), (p, p), (0, 0)))
        acc = b.astype(f32)
        for k in range(K):
            acc = acc + jnp.einsum("btc,cd->btd", hp[:, k:k + T, :], w[k],
                                   precision=jax.lax.Precision.HIGHEST)
        acc = jnp.maximum(acc, 0.0)
        mean = acc.mean(-1, keepdims=True)
        var = ((acc - mean) ** 2).mean(-1, keepdims=True)
        h = (acc - mean) / jnp.sqrt(var + ln_eps) * g + be
    y = jnp.einsum("btc,c->bt", h, linear_weight.astype(f32),
                   precision=jax.lax.Precision.HIGHEST) + linear_bias
    if not training:
        y = jnp.maximum(jnp.round(jnp.exp(y) - 1.0), 0.0).astype(jnp.int32)
    return y


if __name__ == "__main__":
    # Small config: batch=2, seq=16, hidden_size=32,
    # duration_predictor_channels=16, kernel_size=3, layers=2.
    B, T = 2, 16
    hidden_size = 32
    channels = 16
    kernel_size = 3
    num_layers = 2

    key = jax.random.PRNGKey(0)
    keys = jax.random.split(key, 4 * num_layers + 2)
    x = jax.random.normal(keys[0], (B, T, hidden_size), dtype=jnp.float32)

    conv_params = []
    ki = 1
    cin = hidden_size
    for _ in range(num_layers):
        w = 0.3 * jax.random.normal(keys[ki], (kernel_size, cin, channels), jnp.float32); ki += 1
        b = 0.1 * jax.random.normal(keys[ki], (channels,), jnp.float32); ki += 1
        g = 1.0 + 0.1 * jax.random.normal(keys[ki], (channels,), jnp.float32); ki += 1
        be = 0.1 * jax.random.normal(keys[ki], (channels,), jnp.float32); ki += 1
        conv_params.append((w, b, g, be))
        cin = channels
    lw = 0.3 * jax.random.normal(keys[ki], (channels,), jnp.float32); ki += 1
    lb = jnp.float32(0.4)

    out_eval = jax.block_until_ready(
        fastspeech2_duration_predictor(x, conv_params, lw, lb, training=False))
    out_train = jax.block_until_ready(
        fastspeech2_duration_predictor(x, conv_params, lw, lb, training=True))

    ref_eval = _reference(x, conv_params, lw, lb, training=False)
    ref_train = _reference(x, conv_params, lw, lb, training=True)

    assert out_eval.shape == (B, T) and out_eval.dtype == jnp.int32
    assert out_train.shape == (B, T)

    # Log-domain (training-mode forward) output: tolerance covers bf16 MXU matmul precision.
    assert jnp.allclose(out_train, ref_train, atol=3e-2, rtol=3e-2), (out_train, ref_train)
    # Eval-mode integer durations: allow +/-1 only at rounding boundaries.
    assert jnp.all(jnp.abs(out_eval.astype(jnp.float32) - ref_eval.astype(jnp.float32)) <= 1.0)
    # In-kernel exp/round/clamp consistent with its own log-domain output
    # (EUP exp vs XLA exp may differ by an ulp at exact .5 boundaries).
    recomputed = jnp.maximum(jnp.round(jnp.exp(out_train) - 1.0), 0.0).astype(jnp.int32)
    assert jnp.all(jnp.abs(out_eval - recomputed) <= 1)

    print("KERNEL_OK")
</pallas_src>

<mosaic_0001>
module attributes {stable_mosaic.version = 11 : i64} {
  func.func @_duration_predictor_kernel(%arg0: i32, %arg1: memref<16x32xbf16, #tpu.memory_space<vmem>>, %arg2: memref<3x32x16xbf16, #tpu.memory_space<vmem>>, %arg3: memref<1x16xf32, #tpu.memory_space<vmem>>, %arg4: memref<1x16xf32, #tpu.memory_space<vmem>>, %arg5: memref<1x16xf32, #tpu.memory_space<vmem>>, %arg6: memref<3x16x16xbf16, #tpu.memory_space<vmem>>, %arg7: memref<1x16xf32, #tpu.memory_space<vmem>>, %arg8: memref<1x16xf32, #tpu.memory_space<vmem>>, %arg9: memref<1x16xf32, #tpu.memory_space<vmem>>, %arg10: memref<1x16xf32, #tpu.memory_space<vmem>>, %arg11: memref<1x1xf32, #tpu.memory_space<vmem>>, %arg12: memref<1x1x16xi32, #tpu.memory_space<vmem>>) attributes {dimension_semantics = [#tpu.dimension_semantics<parallel>], iteration_bounds = array<i64: 2>, scalar_prefetch = 0 : i64, scratch_operands = 0 : i64, tpu.core_type = #tpu.core_type<tc>, window_params = [{transform_indices = @transform_0, window_bounds = array<i64: 16, 32>}, {pipeline_mode = #tpu.pipeline_mode<synchronous>, transform_indices = @transform_1, window_bounds = array<i64: 3, 32, 16>}, {pipeline_mode = #tpu.pipeline_mode<synchronous>, transform_indices = @transform_2, window_bounds = array<i64: 1, 16>}, {pipeline_mode = #tpu.pipeline_mode<synchronous>, transform_indices = @transform_3, window_bounds = array<i64: 1, 16>}, {pipeline_mode = #tpu.pipeline_mode<synchronous>, transform_indices = @transform_4, window_bounds = array<i64: 1, 16>}, {pipeline_mode = #tpu.pipeline_mode<synchronous>, transform_indices = @transform_5, window_bounds = array<i64: 3, 16, 16>}, {pipeline_mode = #tpu.pipeline_mode<synchronous>, transform_indices = @transform_6, window_bounds = array<i64: 1, 16>}, {pipeline_mode = #tpu.pipeline_mode<synchronous>, transform_indices = @transform_7, window_bounds = array<i64: 1, 16>}, {pipeline_mode = #tpu.pipeline_mode<synchronous>, transform_indices = @transform_8, window_bounds = array<i64: 1, 16>}, {pipeline_mode = #tpu.pipeline_mode<synchronous>, transform_indices = @transform_9, window_bounds = array<i64: 1, 16>}, {pipeline_mode = #tpu.pipeline_mode<synchronous>, transform_indices = @transform_10, window_bounds = array<i64: 1, 1>}, {transform_indices = @transform_11, window_bounds = array<i64: 1, 1, 16>}]} {
    %0 = tpu.iota {dimensions = array<i32: 0>} : vector<16x1xi32>
    %c0_i32 = arith.constant 0 : i32
    %1 = vector.broadcast %c0_i32 : i32 to vector<16x1xi32>
    %2 = arith.cmpi sge, %0, %1 : vector<16x1xi32>
    %c1_i32 = arith.constant 1 : i32
    %3 = vector.broadcast %c1_i32 : i32 to vector<16x1xi32>
    %4 = arith.cmpi slt, %0, %3 : vector<16x1xi32>
    %5 = arith.andi %2, %4 : vector<16x1xi1>
    %cst = arith.constant dense<true> : vector<16x1xi1>
    %6 = arith.xori %5, %cst : vector<16x1xi1>
    %c15_i32 = arith.constant 15 : i32
    %7 = vector.broadcast %c15_i32 : i32 to vector<16x1xi32>
    %8 = arith.cmpi sge, %0, %7 : vector<16x1xi32>
    %c16_i32 = arith.constant 16 : i32
    %9 = vector.broadcast %c16_i32 : i32 to vector<16x1xi32>
    %10 = arith.cmpi slt, %0, %9 : vector<16x1xi32>
    %11 = arith.andi %8, %10 : vector<16x1xi1>
    %cst_0 = arith.constant dense<true> : vector<16x1xi1>
    %12 = arith.xori %11, %cst_0 : vector<16x1xi1>
    %c0 = arith.constant 0 : index
    %c0_1 = arith.constant 0 : index
    %13 = vector.load %arg1[%c0, %c0_1] : memref<16x32xbf16, #tpu.memory_space<vmem>>, vector<16x32xbf16>
    %14 = arith.extf %13 : vector<16x32xbf16> to vector<16x32xf32>
    %c1_i32_2 = arith.constant 1 : i32
    %15 = tpu.dynamic_rotate %14 by %c1_i32_2 dim 0 : vector<16x32xf32>, i32 -> vector<16x32xf32>
    %cst_3 = arith.constant 0.000000e+00 : f32
    %16 = vector.shape_cast %6 : vector<16x1xi1> to vector<16x1xi1>
    %17 = vector.broadcast %16 : vector<16x1xi1> to vector<16x32xi1>
    %18 = vector.broadcast %cst_3 : f32 to vector<16x32xf32>
    %19 = arith.select %17, %15, %18 : vector<16x32xi1>, vector<16x32xf32>
    %20 = arith.truncf %19 : vector<16x32xf32> to vector<16x32xbf16>
    %c0_4 = arith.constant 0 : index
    %c0_5 = arith.constant 0 : index
    %c0_6 = arith.constant 0 : index
    %21 = vector.load %arg2[%c0_4, %c0_5, %c0_6] : memref<3x32x16xbf16, #tpu.memory_space<vmem>>, vector<1x32x16xbf16>
    %22 = vector.shape_cast %21 : vector<1x32x16xbf16> to vector<32x16xbf16>
    %cst_7 = arith.constant dense<0.000000e+00> : vector<16x16xf32>
    %23 = tpu.matmul %20, %22, %cst_7 {dimension_numbers = #tpu.dot_dimension_numbers<[1], [0], [0], [1], [0, 0, 1, 1], [], []>} : vector<16x32xbf16>, vector<32x16xbf16>, vector<16x16xf32> -> vector<16x16xf32>
    %24 = arith.truncf %14 : vector<16x32xf32> to vector<16x32xbf16>
    %c1 = arith.constant 1 : index
    %c0_8 = arith.constant 0 : index
    %c0_9 = arith.constant 0 : index
    %25 = vector.load %arg2[%c1, %c0_8, %c0_9] : memref<3x32x16xbf16, #tpu.memory_space<vmem>>, vector<1x32x16xbf16>
    %26 = vector.shape_cast %25 : vector<1x32x16xbf16> to vector<32x16xbf16>
    %cst_10 = arith.constant dense<0.000000e+00> : vector<16x16xf32>
    %27 = tpu.matmul %24, %26, %cst_10 {dimension_numbers = #tpu.dot_dimension_numbers<[1], [0], [0], [1], [0, 0, 1, 1], [], []>} : vector<16x32xbf16>, vector<32x16xbf16>, vector<16x16xf32> -> vector<16x16xf32>
    %28 = arith.addf %23, %27 : vector<16x16xf32>
    %c15_i32_11 = arith.constant 15 : i32
    %29 = tpu.dynamic_rotate %14 by %c15_i32_11 dim 0 : vector<16x32xf32>, i32 -> vector<16x32xf32>
    %cst_12 = arith.constant 0.000000e+00 : f32
    %30 = vector.shape_cast %12 : vector<16x1xi1> to vector<16x1xi1>
    %31 = vector.broadcast %30 : vector<16x1xi1> to vector<16x32xi1>
    %32 = vector.broadcast %cst_12 : f32 to vector<16x32xf32>
    %33 = arith.select %31, %29, %32 : vector<16x32xi1>, vector<16x32xf32>
    %34 = arith.truncf %33 : vector<16x32xf32> to vector<16x32xbf16>
    %c2 = arith.constant 2 : index
    %c0_13 = arith.constant 0 : index
    %c0_14 = arith.constant 0 : index
    %35 = vector.load %arg2[%c2, %c0_13, %c0_14] : memref<3x32x16xbf16, #tpu.memory_space<vmem>>, vector<1x32x16xbf16>
    %36 = vector.shape_cast %35 : vector<1x32x16xbf16> to vector<32x16xbf16>
    %cst_15 = arith.constant dense<0.000000e+00> : vector<16x16xf32>
    %37 = tpu.matmul %34, %36, %cst_15 {dimension_numbers = #tpu.dot_dimension_numbers<[1], [0], [0], [1], [0, 0, 1, 1], [], []>} : vector<16x32xbf16>, vector<32x16xbf16>, vector<16x16xf32> -> vector<16x16xf32>
    %38 = arith.addf %28, %37 : vector<16x16xf32>
    %c0_16 = arith.constant 0 : index
    %c0_17 = arith.constant 0 : index
    %39 = vector.load %arg3[%c0_16, %c0_17] : memref<1x16xf32, #tpu.memory_space<vmem>>, vector<1x16xf32>
    %40 = vector.broadcast %39 : vector<1x16xf32> to vector<16x16xf32>
    %41 = arith.addf %38, %40 : vector<16x16xf32>
    %cst_18 = arith.constant 0.000000e+00 : f32
    %42 = vector.broadcast %cst_18 : f32 to vector<16x16xf32>
    %43 = arith.maximumf %41, %42 : vector<16x16xf32>
    %cst_19 = arith.constant dense<0.000000e+00> : vector<16xf32>
    %44 = vector.multi_reduction <add>, %43, %cst_19 [1] : vector<16x16xf32> to vector<16xf32>
    %45 = vector.shape_cast %44 : vector<16xf32> to vector<16x1xf32>
    %cst_20 = arith.constant 6.250000e-02 : f32
    %46 = vector.broadcast %cst_20 : f32 to vector<16x1xf32>
    %47 = arith.mulf %45, %46 : vector<16x1xf32>
    %48 = arith.mulf %43, %43 : vector<16x16xf32>
    %cst_21 = arith.constant dense<0.000000e+00> : vector<16xf32>
    %49 = vector.multi_reduction <add>, %48, %cst_21 [1] : vector<16x16xf32> to vector<16xf32>
    %50 = vector.shape_cast %49 : vector<16xf32> to vector<16x1xf32>
    %cst_22 = arith.constant 6.250000e-02 : f32
    %51 = vector.broadcast %cst_22 : f32 to vector<16x1xf32>
    %52 = arith.mulf %50, %51 : vector<16x1xf32>
    %53 = arith.mulf %47, %47 : vector<16x1xf32>
    %54 = arith.subf %52, %53 : vector<16x1xf32>
    %cst_23 = arith.constant 0.000000e+00 : f32
    %55 = vector.broadcast %cst_23 : f32 to vector<16x1xf32>
    %56 = arith.maximumf %54, %55 : vector<16x1xf32>
    %57 = vector.broadcast %47 : vector<16x1xf32> to vector<16x16xf32>
    %58 = arith.subf %43, %57 : vector<16x16xf32>
    %cst_24 = arith.constant 9.99999974E-6 : f32
    %59 = vector.broadcast %cst_24 : f32 to vector<16x1xf32>
    %60 = arith.addf %56, %59 : vector<16x1xf32>
    %61 = math.rsqrt %60 : vector<16x1xf32>
    %62 = vector.broadcast %61 : vector<16x1xf32> to vector<16x16xf32>
    %63 = arith.mulf %58, %62 : vector<16x16xf32>
    %c0_25 = arith.constant 0 : index
    %c0_26 = arith.constant 0 : index
    %64 = vector.load %arg4[%c0_25, %c0_26] : memref<1x16xf32, #tpu.memory_space<vmem>>, vector<1x16xf32>
    %65 = vector.broadcast %64 : vector<1x16xf32> to vector<16x16xf32>
    %66 = arith.mulf %63, %65 : vector<16x16xf32>
    %c0_27 = arith.constant 0 : index
    %c0_28 = arith.constant 0 : index
    %67 = vector.load %arg5[%c0_27, %c0_28] : memref<1x16xf32, #tpu.memory_space<vmem>>, vector<1x16xf32>
    %68 = vector.broadcast %67 : vector<1x16xf32> to vector<16x16xf32>
    %69 = arith.addf %66, %68 : vector<16x16xf32>
    %c1_i32_29 = arith.constant 1 : i32
    %70 = tpu.dynamic_rotate %69 by %c1_i32_29 dim 0 : vector<16x16xf32>, i32 -> vector<16x16xf32>
    %cst_30 = arith.constant 0.000000e+00 : f32
    %71 = vector.shape_cast %6 : vector<16x1xi1> to vector<16x1xi1>
    %72 = vector.broadcast %71 : vector<16x1xi1> to vector<16x16xi1>
    %73 = vector.broadcast %cst_30 : f32 to vector<16x16xf32>
    %74 = arith.select %72, %70, %73 : vector<16x16xi1>, vector<16x16xf32>
    %75 = arith.truncf %74 : vector<16x16xf32> to vector<16x16xbf16>
    %c0_31 = arith.constant 0 : index
    %c0_32 = arith.constant 0 : index
    %c0_33 = arith.constant 0 : index
    %76 = vector.load %arg6[%c0_31, %c0_32, %c0_33] : memref<3x16x16xbf16, #tpu.memory_space<vmem>>, vector<1x16x16xbf16>
    %77 = vector.shape_cast %76 : vector<1x16x16xbf16> to vector<16x16xbf16>
    %cst_34 = arith.constant dense<0.000000e+00> : vector<16x16xf32>
    %78 = tpu.matmul %75, %77, %cst_34 {dimension_numbers = #tpu.dot_dimension_numbers<[1], [0], [0], [1], [0, 0, 1, 1], [], []>} : vector<16x16xbf16>, vector<16x16xbf16>, vector<16x16xf32> -> vector<16x16xf32>
    %79 = arith.truncf %69 : vector<16x16xf32> to vector<16x16xbf16>
    %c1_35 = arith.constant 1 : index
    %c0_36 = arith.constant 0 : index
    %c0_37 = arith.constant 0 : index
    %80 = vector.load %arg6[%c1_35, %c0_36, %c0_37] : memref<3x16x16xbf16, #tpu.memory_space<vmem>>, vector<1x16x16xbf16>
    %81 = vector.shape_cast %80 : vector<1x16x16xbf16> to vector<16x16xbf16>
    %cst_38 = arith.constant dense<0.000000e+00> : vector<16x16xf32>
    %82 = tpu.matmul %79, %81, %cst_38 {dimension_numbers = #tpu.dot_dimension_numbers<[1], [0], [0], [1], [0, 0, 1, 1], [], []>} : vector<16x16xbf16>, vector<16x16xbf16>, vector<16x16xf32> -> vector<16x16xf32>
    %83 = arith.addf %78, %82 : vector<16x16xf32>
    %c15_i32_39 = arith.constant 15 : i32
    %84 = tpu.dynamic_rotate %69 by %c15_i32_39 dim 0 : vector<16x16xf32>, i32 -> vector<16x16xf32>
    %cst_40 = arith.constant 0.000000e+00 : f32
    %85 = vector.shape_cast %12 : vector<16x1xi1> to vector<16x1xi1>
    %86 = vector.broadcast %85 : vector<16x1xi1> to vector<16x16xi1>
    %87 = vector.broadcast %cst_40 : f32 to vector<16x16xf32>
    %88 = arith.select %86, %84, %87 : vector<16x16xi1>, vector<16x16xf32>
    %89 = arith.truncf %88 : vector<16x16xf32> to vector<16x16xbf16>
    %c2_41 = arith.constant 2 : index
    %c0_42 = arith.constant 0 : index
    %c0_43 = arith.constant 0 : index
    %90 = vector.load %arg6[%c2_41, %c0_42, %c0_43] : memref<3x16x16xbf16, #tpu.memory_space<vmem>>, vector<1x16x16xbf16>
    %91 = vector.shape_cast %90 : vector<1x16x16xbf16> to vector<16x16xbf16>
    %cst_44 = arith.constant dense<0.000000e+00> : vector<16x16xf32>
    %92 = tpu.matmul %89, %91, %cst_44 {dimension_numbers = #tpu.dot_dimension_numbers<[1], [0], [0], [1], [0, 0, 1, 1], [], []>} : vector<16x16xbf16>, vector<16x16xbf16>, vector<16x16xf32> -> vector<16x16xf32>
    %93 = arith.addf %83, %92 : vector<16x16xf32>
    %c0_45 = arith.constant 0 : index
    %c0_46 = arith.constant 0 : index
    %94 = vector.load %arg7[%c0_45, %c0_46] : memref<1x16xf32, #tpu.memory_space<vmem>>, vector<1x16xf32>
    %95 = vector.broadcast %94 : vector<1x16xf32> to vector<16x16xf32>
    %96 = arith.addf %93, %95 : vector<16x16xf32>
    %cst_47 = arith.constant 0.000000e+00 : f32
    %97 = vector.broadcast %cst_47 : f32 to vector<16x16xf32>
    %98 = arith.maximumf %96, %97 : vector<16x16xf32>
    %cst_48 = arith.constant dense<0.000000e+00> : vector<16xf32>
    %99 = vector.multi_reduction <add>, %98, %cst_48 [1] : vector<16x16xf32> to vector<16xf32>
    %100 = vector.shape_cast %99 : vector<16xf32> to vector<16x1xf32>
    %cst_49 = arith.constant 6.250000e-02 : f32
    %101 = vector.broadcast %cst_49 : f32 to vector<16x1xf32>
    %102 = arith.mulf %100, %101 : vector<16x1xf32>
    %103 = arith.mulf %98, %98 : vector<16x16xf32>
    %cst_50 = arith.constant dense<0.000000e+00> : vector<16xf32>
    %104 = vector.multi_reduction <add>, %103, %cst_50 [1] : vector<16x16xf32> to vector<16xf32>
    %105 = vector.shape_cast %104 : vector<16xf32> to vector<16x1xf32>
    %cst_51 = arith.constant 6.250000e-02 : f32
    %106 = vector.broadcast %cst_51 : f32 to vector<16x1xf32>
    %107 = arith.mulf %105, %106 : vector<16x1xf32>
    %108 = arith.mulf %102, %102 : vector<16x1xf32>
    %109 = arith.subf %107, %108 : vector<16x1xf32>
    %cst_52 = arith.constant 0.000000e+00 : f32
    %110 = vector.broadcast %cst_52 : f32 to vector<16x1xf32>
    %111 = arith.maximumf %109, %110 : vector<16x1xf32>
    %112 = vector.broadcast %102 : vector<16x1xf32> to vector<16x16xf32>
    %113 = arith.subf %98, %112 : vector<16x16xf32>
    %cst_53 = arith.constant 9.99999974E-6 : f32
    %114 = vector.broadcast %cst_53 : f32 to vector<16x1xf32>
    %115 = arith.addf %111, %114 : vector<16x1xf32>
    %116 = math.rsqrt %115 : vector<16x1xf32>
    %117 = vector.broadcast %116 : vector<16x1xf32> to vector<16x16xf32>
    %118 = arith.mulf %113, %117 : vector<16x16xf32>
    %c0_54 = arith.constant 0 : index
    %c0_55 = arith.constant 0 : index
    %119 = vector.load %arg8[%c0_54, %c0_55] : memref<1x16xf32, #tpu.memory_space<vmem>>, vector<1x16xf32>
    %120 = vector.broadcast %119 : vector<1x16xf32> to vector<16x16xf32>
    %121 = arith.mulf %118, %120 : vector<16x16xf32>
    %c0_56 = arith.constant 0 : index
    %c0_57 = arith.constant 0 : index
    %122 = vector.load %arg9[%c0_56, %c0_57] : memref<1x16xf32, #tpu.memory_space<vmem>>, vector<1x16xf32>
    %123 = vector.broadcast %122 : vector<1x16xf32> to vector<16x16xf32>
    %124 = arith.addf %121, %123 : vector<16x16xf32>
    %c0_58 = arith.constant 0 : index
    %c0_59 = arith.constant 0 : index
    %125 = vector.load %arg10[%c0_58, %c0_59] : memref<1x16xf32, #tpu.memory_space<vmem>>, vector<1x16xf32>
    "tpu.trace_start"() <{level = 10 : i32, message = "xc,mc->xm"}> : () -> ()
    %cst_60 = arith.constant dense<0.000000e+00> : vector<1x16xf32>
    %126 = tpu.matmul %125, %124, %cst_60 {dimension_numbers = #tpu.dot_dimension_numbers<[1], [1], [0], [0], [0, 0, 1, 0], [], []>} : vector<1x16xf32>, vector<16x16xf32>, vector<1x16xf32> -> vector<1x16xf32>
    "tpu.trace_stop"() : () -> ()
    %c0_61 = arith.constant 0 : index
    %c0_62 = arith.constant 0 : index
    %127 = vector.load %arg11[%c0_61, %c0_62] : memref<1x1xf32, #tpu.memory_space<vmem>>, vector<1x1xf32>
    %128 = vector.broadcast %127 : vector<1x1xf32> to vector<1x16xf32>
    %129 = arith.addf %126, %128 : vector<1x16xf32>
    %130 = math.exp %129 : vector<1x16xf32>
    %cst_63 = arith.constant 1.000000e+00 : f32
    %131 = vector.broadcast %cst_63 : f32 to vector<1x16xf32>
    %132 = arith.subf %130, %131 : vector<1x16xf32>
    %133 = math.floor %132 : vector<1x16xf32>
    %134 = arith.subf %132, %133 : vector<1x16xf32>
    %cst_64 = arith.constant 5.000000e-01 : f32
    %135 = vector.broadcast %cst_64 : f32 to vector<1x16xf32>
    %136 = arith.mulf %133, %135 : vector<1x16xf32>
    %137 = math.floor %136 : vector<1x16xf32>
    %cst_65 = arith.constant 2.000000e+00 : f32
    %138 = vector.broadcast %cst_65 : f32 to vector<1x16xf32>
    %139 = arith.mulf %138, %137 : vector<1x16xf32>
    %140 = arith.subf %133, %139 : vector<1x16xf32>
    %cst_66 = arith.constant 5.000000e-01 : f32
    %141 = vector.broadcast %cst_66 : f32 to vector<1x16xf32>
    %142 = arith.cmpf ogt, %140, %141 : vector<1x16xf32>
    %cst_67 = arith.constant 5.000000e-01 : f32
    %143 = vector.broadcast %cst_67 : f32 to vector<1x16xf32>
    %144 = arith.cmpf ogt, %134, %143 : vector<1x16xf32>
    %cst_68 = arith.constant 5.000000e-01 : f32
    %145 = vector.broadcast %cst_68 : f32 to vector<1x16xf32>
    %146 = arith.cmpf oeq, %134, %145 : vector<1x16xf32>
    %147 = arith.andi %146, %142 : vector<1x16xi1>
    %148 = arith.ori %144, %147 : vector<1x16xi1>
    %cst_69 = arith.constant 1.000000e+00 : f32
    %cst_70 = arith.constant 0.000000e+00 : f32
    %149 = vector.broadcast %cst_69 : f32 to vector<1x16xf32>
    %150 = vector.broadcast %cst_70 : f32 to vector<1x16xf32>
    %151 = arith.select %148, %149, %150 : vector<1x16xi1>, vector<1x16xf32>
    %152 = arith.addf %133, %151 : vector<1x16xf32>
    %cst_71 = arith.constant 0.000000e+00 : f32
    %cst_72 = arith.constant 2.14748352E+9 : f32
    %153 = vector.broadcast %cst_71 : f32 to vector<1x16xf32>
    %154 = arith.maximumf %153, %152 : vector<1x16xf32>
    %155 = vector.broadcast %cst_72 : f32 to vector<1x16xf32>
    %156 = arith.minimumf %155, %154 : vector<1x16xf32>
    %157 = arith.fptosi %156 : vector<1x16xf32> to vector<1x16xi32>
    %c0_73 = arith.constant 0 : index
    %c0_74 = arith.constant 0 : index
    %c0_75 = arith.constant 0 : index
    %158 = vector.load %arg12[%c0_73, %c0_74, %c0_75] : memref<1x1x16xi32, #tpu.memory_space<vmem>>, vector<1x1x16xi32>
    %159 = vector.shape_cast %158 : vector<1x1x16xi32> to vector<1x16xi32>
    %160 = vector.shape_cast %157 : vector<1x16xi32> to vector<1x1x16xi32>
    tpu.vector_store %arg12[%c0_73, %c0_74, %c0_75], %160 {strides = array<i32>} : memref<1x1x16xi32, #tpu.memory_space<vmem>>, vector<1x1x16xi32>,
    return
  }
  func.func @transform_0(%arg0: i32) -> (i32, i32) {
    %c0_i32 = arith.constant 0 : i32
    %c0_i32_0 = arith.constant 0 : i32
    return %arg0, %c0_i32 : i32, i32
  }
  func.func @transform_1(%arg0: i32) -> (i32, i32, i32) {
    %c0_i32 = arith.constant 0 : i32
    %c0_i32_0 = arith.constant 0 : i32
    %c0_i32_1 = arith.constant 0 : i32
    %c0_i32_2 = arith.constant 0 : i32
    return %c0_i32, %c0_i32_0, %c0_i32_1 : i32, i32, i32
  }
  func.func @transform_2(%arg0: i32) -> (i32, i32) {
    %c0_i32 = arith.constant 0 : i32
    %c0_i32_0 = arith.constant 0 : i32
    %c0_i32_1 = arith.constant 0 : i32
    return %c0_i32, %c0_i32_0 : i32, i32
  }
  func.func @transform_3(%arg0: i32) -> (i32, i32) {
    %c0_i32 = arith.constant 0 : i32
    %c0_i32_0 = arith.constant 0 : i32
    %c0_i32_1 = arith.constant 0 : i32
    return %c0_i32, %c0_i32_0 : i32, i32
  }
  func.func @transform_4(%arg0: i32) -> (i32, i32) {
    %c0_i32 = arith.constant 0 : i32
    %c0_i32_0 = arith.constant 0 : i32
    %c0_i32_1 = arith.constant 0 : i32
    return %c0_i32, %c0_i32_0 : i32, i32
  }
  func.func @transform_5(%arg0: i32) -> (i32, i32, i32) {
    %c0_i32 = arith.constant 0 : i32
    %c0_i32_0 = arith.constant 0 : i32
    %c0_i32_1 = arith.constant 0 : i32
    %c0_i32_2 = arith.constant 0 : i32
    return %c0_i32, %c0_i32_0, %c0_i32_1 : i32, i32, i32
  }
  func.func @transform_6(%arg0: i32) -> (i32, i32) {
    %c0_i32 = arith.constant 0 : i32
    %c0_i32_0 = arith.constant 0 : i32
    %c0_i32_1 = arith.constant 0 : i32
    return %c0_i32, %c0_i32_0 : i32, i32
  }
  func.func @transform_7(%arg0: i32) -> (i32, i32) {
    %c0_i32 = arith.constant 0 : i32
    %c0_i32_0 = arith.constant 0 : i32
    %c0_i32_1 = arith.constant 0 : i32
    return %c0_i32, %c0_i32_0 : i32, i32
  }
  func.func @transform_8(%arg0: i32) -> (i32, i32) {
    %c0_i32 = arith.constant 0 : i32
    %c0_i32_0 = arith.constant 0 : i32
    %c0_i32_1 = arith.constant 0 : i32
    return %c0_i32, %c0_i32_0 : i32, i32
  }
  func.func @transform_9(%arg0: i32) -> (i32, i32) {
    %c0_i32 = arith.constant 0 : i32
    %c0_i32_0 = arith.constant 0 : i32
    %c0_i32_1 = arith.constant 0 : i32
    return %c0_i32, %c0_i32_0 : i32, i32
  }
  func.func @transform_10(%arg0: i32) -> (i32, i32) {
    %c0_i32 = arith.constant 0 : i32
    %c0_i32_0 = arith.constant 0 : i32
    %c0_i32_1 = arith.constant 0 : i32
    return %c0_i32, %c0_i32_0 : i32, i32
  }
  func.func @transform_11(%arg0: i32) -> (i32, i32, i32) {
    %c0_i32 = arith.constant 0 : i32
    %c0_i32_0 = arith.constant 0 : i32
    %c0_i32_1 = arith.constant 0 : i32
    return %arg0, %c0_i32, %c0_i32_0 : i32, i32, i32
  }
}

</mosaic_0001>

<llo_original>
// kernel: tpu_custom_call.1
$region0: #{tpu_custom_call.1}
  #allocation0 [shape = 'u32[]', space=smem, size = 0x4, offset = 0x4, fixed_abs, tag = 'smem constant byte address 0x4 - core index']
  #allocation1 [shape = 'u32[144,128]{1,0:T(1,128)}', space=vmem, size = 0x12000, scoped, tag = 'internal scratch']
  #allocation2 [shape = 'f32[1,1]{1,0:T(1,128)S(1)}', space=vmem, size = 0x200, scoped, tag = 'scoped memory for tpu_custom_call.1']
  %s0 = inlined_call_operand.vmem [shape: bf16[32,32], index: 0, kind: input, shape index: {}]
  %s1 = inlined_call_operand.vmem [shape: bf16[3,32,16], index: 1, kind: input, shape index: {}]
  %s2 = inlined_call_operand.vmem [shape: f32[1,16], index: 2, kind: input, shape index: {}]
  %s3 = inlined_call_operand.vmem [shape: f32[1,16], index: 3, kind: input, shape index: {}]
  %s4 = inlined_call_operand.vmem [shape: f32[1,16], index: 4, kind: input, shape index: {}]
  %s5 = inlined_call_operand.vmem [shape: bf16[3,16,16], index: 5, kind: input, shape index: {}]
  %s6 = inlined_call_operand.vmem [shape: f32[1,16], index: 6, kind: input, shape index: {}]
  %s7 = inlined_call_operand.vmem [shape: f32[1,16], index: 7, kind: input, shape index: {}]
  %s8 = inlined_call_operand.vmem [shape: f32[1,16], index: 8, kind: input, shape index: {}]
  %s9 = inlined_call_operand.vmem [shape: f32[1,16], index: 9, kind: input, shape index: {}]
  %s10 = inlined_call_operand.<no memory space> [shape: f32[1,1], index: 10, kind: input, shape index: {}]
  %s11 = inlined_call_operand.hbm [shape: s32[2,1,16], index: 11, kind: output, shape index: {}]
  %s12 = sld [smem:[#allocation0]]
  $region77: #{tpu_custom_call.1} parent=0
    _
  %s14 = ssub.s32 1, %s12
  %s15 = scalar_select 0, %s14, %s12
  %v16 = vstv %s10
  %17 = vst [vmem:[#allocation2] sm:$0x1] %v16
  $region1: #{tpu_custom_call.1} parent=0
    #allocation3 [shape = 'u8[1024]{0}', space=vmem, size = 0x400, scoped, tag = 'output window, operand 0']
    #allocation4 [shape = 's32[2]{0}', space=sflag, size = 0x8, scoped, tag = 'scoped memory for tpu_custom_call.1']
    %18 = vsyncpa [#allocation4], 0
    %s19 = scalar_lea.sflag [#allocation4], 1
    %20 = vsyncpa %s19, 0
    loop: start=0, step=1, limit=4
    $region2: #{tpu_custom_call.1} parent=1 // loop_pre_header
      _
    $region3: #{tpu_custom_call.1} parent=1 // loop_header
      %s22 = sphi 0, %s26
      %p23 = scmp.ge.s32.totalorder %s22, 4
      %s32 = sphi 0, %s34
      %s35 = sphi 0, %s32
      %s36 = sphi 0, %s35
      %s52 = sphi 0, %s36
      %s56 = sphi 0, %s56
      %s58 = sphi 0, %s56
      %s59 = sphi 0, %s58
      %s73 = sphi 0, %s59
      %s77 = sphi 0, %s77
      %s79 = sphi 0, %s77
      %s80 = sphi 0, %s79
      %s94 = sphi 0, %s80
      %s98 = sphi 0, %s98
      %s100 = sphi 0, %s98
      %s101 = sphi 0, %s100
      %s115 = sphi 0, %s101
      %s119 = sphi 0, %s119
      %s121 = sphi 0, %s119
      %s122 = sphi 0, %s121
      %s136 = sphi 0, %s122
      %s140 = sphi 0, %s140
      %s142 = sphi 0, %s140
      %s143 = sphi 0, %s142
      %s157 = sphi 0, %s143
      %s161 = sphi 0, %s161
      %s163 = sphi 0, %s161
      %s164 = sphi 0, %s163
      %s178 = sphi 0, %s164
      %s182 = sphi 0, %s182
      %s184 = sphi 0, %s182
      %s185 = sphi 0, %s184
      %s199 = sphi 0, %s185
      %s203 = sphi 0, %s203
      %s205 = sphi 0, %s203
      %s206 = sphi 0, %s205
      %s220 = sphi 0, %s206
      %s224 = sphi 0, %s224
      %s226 = sphi 0, %s224
      %s227 = sphi 0, %s226
      %s241 = sphi 0, %s227
      %s245 = sphi 0, %s245
      %s247 = sphi 0, %s245
      %s248 = sphi 0, %s247
      %s262 = sphi 0, %s248
      %s268 = sphi 0, %s270
      %s271 = sphi 0, %s268
      %s272 = sphi 0, %s271
      %s288 = sphi 0, %s272
    $region4: #{tpu_custom_call.1} parent=1 // loop_header_branch
      %25 = sbr.rel (%p23) target = $region8
    $region5: #{tpu_custom_call.1} parent=1 // loop_body
      %s27 = ssub.s32 %s22, 1
      %s28 = ssub.s32 %s22, 2
      %s29 = sadd.s32 %s22, 1
      %s30 = ssub.s32 %s22, %s29
      %p31 = scmp.eq.s32.totalorder %s30, 0
      %s33 = sadd.s32 %s32, 1
      %s34 = scalar_select %p31, %s32, %s33
      %p37 = pneg %p31
      %p38 = scmp.eq.s32.totalorder %s22, 1
      %p39 = por %p37, %p38
      %p40 = scmp.ne.s32.totalorder %s32, %s35
      %p41 = scmp.eq.s32.totalorder %s22, 0
      %p42 = por %p40, %p41
      %p43 = scmp.ne.s32.totalorder %s32, %s35
      %p44 = scmp.eq.s32.totalorder %s27, 1
      %p45 = por %p43, %p44
      %p46 = scmp.ne.s32.totalorder %s35, %s36
      %p47 = scmp.eq.s32.totalorder %s27, 0
      %p48 = por %p46, %p47
      %p49 = scmp.ne.s32.totalorder %s35, %s36
      %p50 = scmp.eq.s32.totalorder %s28, 1
      %p51 = por %p49, %p50
      %p53 = scmp.ne.s32.totalorder %s36, %s52
      %p54 = scmp.eq.s32.totalorder %s28, 0
      %p55 = por %p53, %p54
      %s57 = sadd.s32 %s56, 1
      %p60 = scmp.eq.s32.totalorder %s22, 1
      %p61 = scmp.ne.s32.totalorder %s56, %s58
      %p62 = scmp.eq.s32.totalorder %s22, 0
      %p63 = por %p61, %p62
      %p64 = scmp.ne.s32.totalorder %s56, %s58
      %p65 = scmp.eq.s32.totalorder %s27, 1
      %p66 = por %p64, %p65
      %p67 = scmp.ne.s32.totalorder %s58, %s59
      %p68 = scmp.eq.s32.totalorder %s27, 0
      %p69 = por %p67, %p68
      %p70 = scmp.ne.s32.totalorder %s58, %s59
      %p71 = scmp.eq.s32.totalorder %s28, 1
      %p72 = por %p70, %p71
      %p74 = scmp.ne.s32.totalorder %s59, %s73
      %p75 = scmp.eq.s32.totalorder %s28, 0
      %p76 = por %p74, %p75
      %s78 = sadd.s32 %s77, 1
      %p81 = scmp.eq.s32.totalorder %s22, 1
      %p82 = scmp.ne.s32.totalorder %s77, %s79
      %p83 = scmp.eq.s32.totalorder %s22, 0
      %p84 = por %p82, %p83
      %p85 = scmp.ne.s32.totalorder %s77, %s79
      %p86 = scmp.eq.s32.totalorder %s27, 1
      %p87 = por %p85, %p86
      %p88 = scmp.ne.s32.totalorder %s79, %s80
      %p89 = scmp.eq.s32.totalorder %s27, 0
      %p90 = por %p88, %p89
      %p91 = scmp.ne.s32.totalorder %s79, %s80
      %p92 = scmp.eq.s32.totalorder %s28, 1
      %p93 = por %p91, %p92
      %p95 = scmp.ne.s32.totalorder %s80, %s94
      %p96 = scmp.eq.s32.totalorder %s28, 0
      %p97 = por %p95, %p96
      %s99 = sadd.s32 %s98, 1
      %p102 = scmp.eq.s32.totalorder %s22, 1
      %p103 = scmp.ne.s32.totalorder %s98, %s100
      %p104 = scmp.eq.s32.totalorder %s22, 0
      %p105 = por %p103, %p104
      %p106 = scmp.ne.s32.totalorder %s98, %s100
      %p107 = scmp.eq.s32.totalorder %s27, 1
      %p108 = por %p106, %p107
      %p109 = scmp.ne.s32.totalorder %s100, %s101
      %p110 = scmp.eq.s32.totalorder %s27, 0
      %p111 = por %p109, %p110
      %p112 = scmp.ne.s32.totalorder %s100, %s101
      %p113 = scmp.eq.s32.totalorder %s28, 1
      %p114 = por %p112, %p113
      %p116 = scmp.ne.s32.totalorder %s101, %s115
      %p117 = scmp.eq.s32.totalorder %s28, 0
      %p118 = por %p116, %p117
      %s120 = sadd.s32 %s119, 1
      %p123 = scmp.eq.s32.totalorder %s22, 1
      %p124 = scmp.ne.s32.totalorder %s119, %s121
      %p125 = scmp.eq.s32.totalorder %s22, 0
      %p126 = por %p124, %p125
      %p127 = scmp.ne.s32.totalorder %s119, %s121
      %p128 = scmp.eq.s32.totalorder %s27, 1
      %p129 = por %p127, %p128
      %p130 = scmp.ne.s32.totalorder %s121, %s122
      %p131 = scmp.eq.s32.totalorder %s27, 0
      %p132 = por %p130, %p131
      %p133 = scmp.ne.s32.totalorder %s121, %s122
      %p134 = scmp.eq.s32.totalorder %s28, 1
      %p135 = por %p133, %p134
      %p137 = scmp.ne.s32.totalorder %s122, %s136
      %p138 = scmp.eq.s32.totalorder %s28, 0
      %p139 = por %p137, %p138
      %s141 = sadd.s32 %s140, 1
      %p144 = scmp.eq.s32.totalorder %s22, 1
      %p145 = scmp.ne.s32.totalorder %s140, %s142
      %p146 = scmp.eq.s32.totalorder %s22, 0
      %p147 = por %p145, %p146
      %p148 = scmp.ne.s32.totalorder %s140, %s142
      %p149 = scmp.eq.s32.totalorder %s27, 1
      %p150 = por %p148, %p149
      %p151 = scmp.ne.s32.totalorder %s142, %s143
      %p152 = scmp.eq.s32.totalorder %s27, 0
      %p153 = por %p151, %p152
      %p154 = scmp.ne.s32.totalorder %s142, %s143
      %p155 = scmp.eq.s32.totalorder %s28, 1
      %p156 = por %p154, %p155
      %p158 = scmp.ne.s32.totalorder %s143, %s157
      %p159 = scmp.eq.s32.totalorder %s28, 0
      %p160 = por %p158, %p159
      %s162 = sadd.s32 %s161, 1
      %p165 = scmp.eq.s32.totalorder %s22, 1
      %p166 = scmp.ne.s32.totalorder %s161, %s163
      %p167 = scmp.eq.s32.totalorder %s22, 0
      %p168 = por %p166, %p167
      %p169 = scmp.ne.s32.totalorder %s161, %s163
      %p170 = scmp.eq.s32.totalorder %s27, 1
      %p171 = por %p169, %p170
      %p172 = scmp.ne.s32.totalorder %s163, %s164
      %p173 = scmp.eq.s32.totalorder %s27, 0
      %p174 = por %p172, %p173
      %p175 = scmp.ne.s32.totalorder %s163, %s164
      %p176 = scmp.eq.s32.totalorder %s28, 1
      %p177 = por %p175, %p176
      %p179 = scmp.ne.s32.totalorder %s164, %s178
      %p180 = scmp.eq.s32.totalorder %s28, 0
      %p181 = por %p179, %p180
      %s183 = sadd.s32 %s182, 1
      %p186 = scmp.eq.s32.totalorder %s22, 1
      %p187 = scmp.ne.s32.totalorder %s182, %s184
      %p188 = scmp.eq.s32.totalorder %s22, 0
      %p189 = por %p187, %p188
      %p190 = scmp.ne.s32.totalorder %s182, %s184
      %p191 = scmp.eq.s32.totalorder %s27, 1
      %p192 = por %p190, %p191
      %p193 = scmp.ne.s32.totalorder %s184, %s185
      %p194 = scmp.eq.s32.totalorder %s27, 0
      %p195 = por %p193, %p194
      %p196 = scmp.ne.s32.totalorder %s184, %s185
      %p197 = scmp.eq.s32.totalorder %s28, 1
      %p198 = por %p196, %p197
      %p200 = scmp.ne.s32.totalorder %s185, %s199
      %p201 = scmp.eq.s32.totalorder %s28, 0
      %p202 = por %p200, %p201
      %s204 = sadd.s32 %s203, 1
      %p207 = scmp.eq.s32.totalorder %s22, 1
      %p208 = scmp.ne.s32.totalorder %s203, %s205
      %p209 = scmp.eq.s32.totalorder %s22, 0
      %p210 = por %p208, %p209
      %p211 = scmp.ne.s32.totalorder %s203, %s205
      %p212 = scmp.eq.s32.totalorder %s27, 1
      %p213 = por %p211, %p212
      %p214 = scmp.ne.s32.totalorder %s205, %s206
      %p215 = scmp.eq.s32.totalorder %s27, 0
      %p216 = por %p214, %p215
      %p217 = scmp.ne.s32.totalorder %s205, %s206
      %p218 = scmp.eq.s32.totalorder %s28, 1
      %p219 = por %p217, %p218
      %p221 = scmp.ne.s32.totalorder %s206, %s220
      %p222 = scmp.eq.s32.totalorder %s28, 0
      %p223 = por %p221, %p222
      %s225 = sadd.s32 %s224, 1
      %p228 = scmp.eq.s32.totalorder %s22, 1
      %p229 = scmp.ne.s32.totalorder %s224, %s226
      %p230 = scmp.eq.s32.totalorder %s22, 0
      %p231 = por %p229, %p230
      %p232 = scmp.ne.s32.totalorder %s224, %s226
      %p233 = scmp.eq.s32.totalorder %s27, 1
      %p234 = por %p232, %p233
      %p235 = scmp.ne.s32.totalorder %s226, %s227
      %p236 = scmp.eq.s32.totalorder %s27, 0
      %p237 = por %p235, %p236
      %p238 = scmp.ne.s32.totalorder %s226, %s227
      %p239 = scmp.eq.s32.totalorder %s28, 1
      %p240 = por %p238, %p239
      %p242 = scmp.ne.s32.totalorder %s227, %s241
      %p243 = scmp.eq.s32.totalorder %s28, 0
      %p244 = por %p242, %p243
      %s246 = sadd.s32 %s245, 1
      %p249 = scmp.eq.s32.totalorder %s22, 1
      %p250 = scmp.ne.s32.totalorder %s245, %s247
      %p251 = scmp.eq.s32.totalorder %s22, 0
      %p252 = por %p250, %p251
      %p253 = scmp.ne.s32.totalorder %s245, %s247
      %p254 = scmp.eq.s32.totalorder %s27, 1
      %p255 = por %p253, %p254
      %p256 = scmp.ne.s32.totalorder %s247, %s248
      %p257 = scmp.eq.s32.totalorder %s27, 0
      %p258 = por %p256, %p257
      %p259 = scmp.ne.s32.totalorder %s247, %s248
      %p260 = scmp.eq.s32.totalorder %s28, 1
      %p261 = por %p259, %p260
      %p263 = scmp.ne.s32.totalorder %s248, %s262
      %p264 = scmp.eq.s32.totalorder %s28, 0
      %p265 = por %p263, %p264
      %s266 = ssub.s32 %s22, %s29
      %p267 = scmp.eq.s32.totalorder %s266, 0
      %s269 = sadd.s32 %s268, 1
      %s270 = scalar_select %p267, %s268, %s269
      %p273 = pneg %p267
      %p274 = scmp.eq.s32.totalorder %s22, 1
      %p275 = por %p273, %p274
      %p276 = scmp.ne.s32.totalorder %s268, %s271
      %p277 = scmp.eq.s32.totalorder %s22, 0
      %p278 = por %p276, %p277
      %p279 = scmp.ne.s32.totalorder %s268, %s271
      %p280 = scmp.eq.s32.totalorder %s27, 1
      %p281 = por %p279, %p280
      %p282 = scmp.ne.s32.totalorder %s271, %s272
      %p283 = scmp.eq.s32.totalorder %s27, 0
      %p284 = por %p282, %p283
      %p285 = scmp.ne.s32.totalorder %s271, %s272
      %p286 = scmp.eq.s32.totalorder %s28, 1
      %p287 = por %p285, %p286
      %p289 = scmp.ne.s32.totalorder %s272, %s288
      %p290 = scmp.eq.s32.totalorder %s28, 0
      %p291 = por %p289, %p290
      %p292 = scmp.le.s32.totalorder 1, %s22
      %p293 = scmp.lt.s32.totalorder %s22, 3
      %p294 = pnand %p292, %p293
      %p295 = pneg %p294
      // Predicated region
      $region9: #{tpu_custom_call.1} parent=5 // pred_check
        _
      $region10: #{tpu_custom_call.1} parent=5 // pred_check_branch
        %297 = sbr.rel (%p294) target = $region12
      $region11: #{tpu_custom_call.1} parent=5 // pred_region
        %s298 = ssub.s32 %s22, 1
        // Predicated region
        $region13: #{tpu_custom_call.1} parent=11 // pred_check
          %p299 = pneg %p69
        $region14: #{tpu_custom_call.1} parent=11 // pred_check_branch
          %301 = sbr.rel (%p299) target = $region16
        $region15: #{tpu_custom_call.1} parent=11 // pred_region
          _
        $region16: #{tpu_custom_call.1} parent=11 // pred_fallthru
          _
        // Predicated region
        $region17: #{tpu_custom_call.1} parent=11 // pred_check
          %p302 = pneg %p90
        $region18: #{tpu_custom_call.1} parent=11 // pred_check_branch
          %304 = sbr.rel (%p302) target = $region20
        $region19: #{tpu_custom_call.1} parent=11 // pred_region
          _
        $region20: #{tpu_custom_call.1} parent=11 // pred_fallthru
          _
        // Predicated region
        $region21: #{tpu_custom_call.1} parent=11 // pred_check
          %p305 = pneg %p111
        $region22: #{tpu_custom_call.1} parent=11 // pred_check_branch
          %307 = sbr.rel (%p305) target = $region24
        $region23: #{tpu_custom_call.1} parent=11 // pred_region
          _
        $region24: #{tpu_custom_call.1} parent=11 // pred_fallthru
          _
        // Predicated region
        $region25: #{tpu_custom_call.1} parent=11 // pred_check
          %p308 = pneg %p132
        $region26: #{tpu_custom_call.1} parent=11 // pred_check_branch
          %310 = sbr.rel (%p308) target = $region28
        $region27: #{tpu_custom_call.1} parent=11 // pred_region
          _
        $region28: #{tpu_custom_call.1} parent=11 // pred_fallthru
          _
        // Predicated region
        $region29: #{tpu_custom_call.1} parent=11 // pred_check
          %p311 = pneg %p153
        $region30: #{tpu_custom_call.1} parent=11 // pred_check_branch
          %313 = sbr.rel (%p311) target = $region32
        $region31: #{tpu_custom_call.1} parent=11 // pred_region
          _
        $region32: #{tpu_custom_call.1} parent=11 // pred_fallthru
          _
        // Predicated region
        $region33: #{tpu_custom_call.1} parent=11 // pred_check
          %p314 = pneg %p174
        $region34: #{tpu_custom_call.1} parent=11 // pred_check_branch
          %316 = sbr.rel (%p314) target = $region36
        $region35: #{tpu_custom_call.1} parent=11 // pred_region
          _
        $region36: #{tpu_custom_call.1} parent=11 // pred_fallthru
          _
        // Predicated region
        $region37: #{tpu_custom_call.1} parent=11 // pred_check
          %p317 = pneg %p195
        $region38: #{tpu_custom_call.1} parent=11 // pred_check_branch
          %319 = sbr.rel (%p317) target = $region40
        $region39: #{tpu_custom_call.1} parent=11 // pred_region
          _
        $region40: #{tpu_custom_call.1} parent=11 // pred_fallthru
          _
        // Predicated region
        $region41: #{tpu_custom_call.1} parent=11 // pred_check
          %p320 = pneg %p216
        $region42: #{tpu_custom_call.1} parent=11 // pred_check_branch
          %322 = sbr.rel (%p320) target = $region44
        $region43: #{tpu_custom_call.1} parent=11 // pred_region
          _
        $region44: #{tpu_custom_call.1} parent=11 // pred_fallthru
          _
        // Predicated region
        $region45: #{tpu_custom_call.1} parent=11 // pred_check
          %p323 = pneg %p237
        $region46: #{tpu_custom_call.1} parent=11 // pred_check_branch
          %325 = sbr.rel (%p323) target = $region48
        $region47: #{tpu_custom_call.1} parent=11 // pred_region
          _
        $region48: #{tpu_custom_call.1} parent=11 // pred_fallthru
          _
        // Predicated region
        $region49: #{tpu_custom_call.1} parent=11 // pred_check
          %p326 = pneg %p258
        $region50: #{tpu_custom_call.1} parent=11 // pred_check_branch
          %328 = sbr.rel (%p326) target = $region52
        $region51: #{tpu_custom_call.1} parent=11 // pred_region
          _
        $region52: #{tpu_custom_call.1} parent=11 // pred_fallthru
          _
      $region12: #{tpu_custom_call.1} parent=5 // pred_fallthru
        _
      %p329 = scmp.lt.s32.totalorder %s22, 2
      // Predicated region
      $region53: #{tpu_custom_call.1} parent=5 // pred_check
        %p330 = pneg %p329
      $region54: #{tpu_custom_call.1} parent=5 // pred_check_branch
        %332 = sbr.rel (%p330) target = $region56
      $region55: #{tpu_custom_call.1} parent=5 // pred_region
        // Predicated region
        $region57: #{tpu_custom_call.1} parent=55 // pred_check
          %p333 = pneg %p42
        $region58: #{tpu_custom_call.1} parent=55 // pred_check_branch
          %335 = sbr.rel (%p333) target = $region60
        $region59: #{tpu_custom_call.1} parent=55 // pred_region
          %s336 = smul.u32 2, %s22
          %p337 = scmp.lt.s32.totalorder %s336, 3
          %s338 = scalar_select %p337, %s336, 3
          %s339 = smul.addr %s338, 4
          %s340 = scalar_lea.vmem %s0, %s339
          %s341 = smul.u32 2, %s22
        $region60: #{tpu_custom_call.1} parent=55 // pred_fallthru
          _
      $region56: #{tpu_custom_call.1} parent=5 // pred_fallthru
        _
      %p342 = scmp.le.s32.totalorder 1, %s22
      %p343 = scmp.lt.s32.totalorder %s22, 3
      %p344 = pnand %p342, %p343
      %p345 = pneg %p344
      // Predicated region
      $region61: #{tpu_custom_call.1} parent=5 // pred_check
        _
      $region62: #{tpu_custom_call.1} parent=5 // pred_check_branch
        %347 = sbr.rel (%p344) target = $region64
      $region63: #{tpu_custom_call.1} parent=5 // pred_region
        %s348 = ssub.s32 %s22, 1
        %s349 = smul.u32 2, %s27
        %p350 = scmp.lt.s32.totalorder %s349, 3
        %s351 = scalar_select %p350, %s349, 3
        %s352 = smul.addr %s351, 4
        %s353 = scalar_lea.vmem %s0, %s352
        %p354 = pneg %p48
        %p355 = pneg %p45
        %p356 = pneg %p69
        %p357 = pneg %p66
        %p358 = pneg %p90
        %p359 = pneg %p87
        %p360 = pneg %p111
        %p361 = pneg %p108
        %p362 = pneg %p132
        %p363 = pneg %p129
        %p364 = pneg %p153
        %p365 = pneg %p150
        %p366 = pneg %p174
        %p367 = pneg %p171
        %p368 = pneg %p195
        %p369 = pneg %p192
        %p370 = pneg %p216
        %p371 = pneg %p213
        %p372 = pneg %p237
        %p373 = pneg %p234
        %p374 = pneg %p258
        %p375 = pneg %p255
        %p376 = pneg %p284
        %p377 = pneg %p281
        %s378 = sand.u32 %s271, 1
        %s379 = scalar_lea.sflag [#allocation4], %s378
        %s380 = sand.u32 %s271, 1
        %s381 = scalar_lea.vmem [#allocation3], %s380
        %s382 = smul.u32 2, %s27
        %p383 = scmp.lt.s32.totalorder %s382, 3
        %s384 = scalar_select %p383, %s382, 3
        %s385 = smul.addr %s384, 4
        %s386 = scalar_lea.vmem %s0, %s385
        %s387 = smul.u32 2, %s27
        %v389 = vlaneseq
        %v390 = vshrl.u32 %v389, 7
        %v391 = vadd.s32 %v390, 8
        %vm392 = vcmp.ge.s32.totalorder %v390, 0
        %vm393 = vcmp.ge.s32.totalorder %v391, 0
        %vm394 = vcmp.lt.s32.totalorder %v390, 1
        %vm395 = vcmp.lt.s32.totalorder %v391, 1
        %vm396 = vmand %vm392, %vm394
        %vm397 = vmand %vm393, %vm395
        %vm398 = vmxor %vm396, 1
        %vm399 = vmxor %vm397, 1
        %vm400 = vcmp.ge.s32.totalorder %v390, 15
        %vm401 = vcmp.ge.s32.totalorder %v391, 15
        %vm402 = vcmp.lt.s32.totalorder %v390, 16
        %vm403 = vcmp.lt.s32.totalorder %v391, 16
        %vm404 = vmand %vm400, %vm402
        %vm405 = vmand %vm401, %vm403
        %vm406 = vmxor %vm404, 1
        %vm407 = vmxor %vm405, 1
        %v408 = vld [vmem:[%s386] sm:$0xf]
        %v409 = vld [vmem:[%s386 + $0x4] sm:$0xf]
        %v410 = vunpack.c.l.bf16 %v408
        %v411 = vunpack.c.l.bf16 %v409
        %v412 = vrot.slane %v410, 7
        %v413 = vrot.slane %v411, 7
        %v414 = vsel %vm394, %v412, %v413
        %v415 = vsel %vm394, %v413, %v412
        %v416 = vsel %vm398, 1, 0
        %v417 = vsel %vm399, 1, 0
        %vm418 = vcmp.eq.s32.totalorder %v416, 1
        %vm419 = vcmp.eq.s32.totalorder %v417, 1
        %v420 = vsel %vm418, %v415, 0.0
        %v421 = vsel %vm419, %v414, 0.0
        %v422 = vpack.c.bf16 %v421, %v420
        %v423 = vld [vmem:[%s1] sm:$0xf]
        %v424 = vld [vmem:[%s1 + $0x4] sm:$0xf]
        %v425 = vld [vmem:[%s1 + $0x8] sm:$0xf]
        %v426 = vld [vmem:[%s1 + $0xc] sm:$0xf]
        %s427 = scalar_lea.vmem %s1, 16
        %v428 = vld [vmem:[%s427] sm:$0xf]
        %v429 = vld [vmem:[%s427 + $0x4] sm:$0xf]
        %v430 = vld [vmem:[%s427 + $0x8] sm:$0xf]
        %v431 = vld [vmem:[%s427 + $0xc] sm:$0xf]
        %v434 = vunpack.c.l.b16 %v408
        %v435 = vunpack.c.l.b16 %v409
        %v436 = vpack.c.b16 %v435, %v434
        %v441 = vunpack.c.l.b16 %v428
        %v442 = vunpack.c.l.b16 %v429
        %v443 = vunpack.c.l.b16 %v430
        %v444 = vunpack.c.l.b16 %v431
        %v445 = vpack.c.b16 %v442, %v441
        %v446 = vpack.c.b16 %v444, %v443
        %vm449 = vcmask 261120
        %v451 = vsel %vm449, %v436, 0
        %453 = vmatprep.subr.bf16.mxu0 0
        %454 = vmatpush1.bf16.msra.mxu0 %v445
        %455 = vmatprep.subr.bf16.mxu0 0
        %456 = vmatpush1.bf16.msra.mxu0 %v446
        %457 = vmatprep.subr.bf16.mxu0 0
        %458 = vmatpush1.bf16.msra.mxu0 0
        %459 = vmatprep.subr.bf16.mxu0 0
        %460 = vmatpush1.bf16.msra.mxu0 0
        %461 = vmatprep.subr.bf16.mxu0 0
        %462 = vmatpush1.bf16.msra.mxu0 0
        %463 = vmatprep.subr.bf16.mxu0 0
        %464 = vmatpush1.bf16.msra.mxu0 0
        %465 = vmatprep.subr.bf16.mxu0 0
        %466 = vmatpush1.bf16.msra.mxu0 0
        %467 = vmatprep.subr.bf16.mxu0 0
        %468 = vmatpush1.bf16.msra.mxu0 0
        %469 = vmatprep.subr.bf16.mxu0 0
        %470 = vmatpush1.bf16.msra.mxu0 0
        %471 = vmatprep.subr.bf16.mxu0 0
        %472 = vmatpush1.bf16.msra.mxu0 0
        %473 = vmatprep.subr.bf16.mxu0 0
        %474 = vmatpush1.bf16.msra.mxu0 0
        %475 = vmatprep.subr.bf16.mxu0 0
        %476 = vmatpush1.bf16.msra.mxu0 0
        %477 = vmatprep.subr.bf16.mxu0 0
        %478 = vmatpush1.bf16.msra.mxu0 0
        %479 = vmatprep.subr.bf16.mxu0 0
        %480 = vmatpush1.bf16.msra.mxu0 0
        %481 = vmatprep.subr.bf16.mxu0 0
        %482 = vmatpush1.bf16.msra.mxu0 0
        %483 = vmatprep.subr.bf16.mxu0 0
        %484 = vmatpush1.bf16.msra.mxu0 0
        %485 = vmatprep.mubr.bf16.mxu0 0
        %486 = vmatmul.mubr.bf16.gmra.mrb[0].mxu0 %v451
        %v487 = vpop.f32.mrb[0].mxu0
        %v488 = vadd.f32 0.0, %v487
        %v489 = vpop.f32.mrb[0].mxu0
        %v490 = vpop.f32.mrb[0].mxu0
        %v491 = vadd.f32 0.0, %v490
        %v492 = vpop.f32.mrb[0].mxu0
        %493 = vdwg.mxu0
        %v498 = vunpack.c.l.b16 %v423
        %v499 = vunpack.c.l.b16 %v424
        %v500 = vunpack.c.l.b16 %v425
        %v501 = vunpack.c.l.b16 %v426
        %v502 = vpack.c.b16 %v499, %v498
        %v503 = vpack.c.b16 %v501, %v500
        %v507 = vsel %vm449, %v422, 0
        %509 = vmatprep.subr.bf16.mxu0 0
        %510 = vmatpush1.bf16.msra.mxu0 %v502
        %511 = vmatprep.subr.bf16.mxu0 0
        %512 = vmatpush1.bf16.msra.mxu0 %v503
        %513 = vmatprep.subr.bf16.mxu0 0
        %514 = vmatpush1.bf16.msra.mxu0 0
        %515 = vmatprep.subr.bf16.mxu0 0
        %516 = vmatpush1.bf16.msra.mxu0 0
        %517 = vmatprep.subr.bf16.mxu0 0
        %518 = vmatpush1.bf16.msra.mxu0 0
        %519 = vmatprep.subr.bf16.mxu0 0
        %520 = vmatpush1.bf16.msra.mxu0 0
        %521 = vmatprep.subr.bf16.mxu0 0
        %522 = vmatpush1.bf16.msra.mxu0 0
        %523 = vmatprep.subr.bf16.mxu0 0
        %524 = vmatpush1.bf16.msra.mxu0 0
        %525 = vmatprep.subr.bf16.mxu0 0
        %526 = vmatpush1.bf16.msra.mxu0 0
        %527 = vmatprep.subr.bf16.mxu0 0
        %528 = vmatpush1.bf16.msra.mxu0 0
        %529 = vmatprep.subr.bf16.mxu0 0
        %530 = vmatpush1.bf16.msra.mxu0 0
        %531 = vmatprep.subr.bf16.mxu0 0
        %532 = vmatpush1.bf16.msra.mxu0 0
        %533 = vmatprep.subr.bf16.mxu0 0
        %534 = vmatpush1.bf16.msra.mxu0 0
        %535 = vmatprep.subr.bf16.mxu0 0
        %536 = vmatpush1.bf16.msra.mxu0 0
        %537 = vmatprep.subr.bf16.mxu0 0
        %538 = vmatpush1.bf16.msra.mxu0 0
        %539 = vmatprep.subr.bf16.mxu0 0
        %540 = vmatpush1.bf16.msra.mxu0 0
        %541 = vmatprep.mubr.bf16.mxu0 0
        %542 = vmatmul.mubr.bf16.gmra.mrb[0].mxu0 %v507
        %v543 = vpop.f32.mrb[0].mxu0
        %v544 = vadd.f32 %v488, %v543
        %v545 = vpop.f32.mrb[0].mxu0
        %v546 = vpop.f32.mrb[0].mxu0
        %v547 = vadd.f32 %v491, %v546
        %v548 = vpop.f32.mrb[0].mxu0
        %549 = vdwg.mxu0
        %v550 = vrot.slane %v410, 1
        %v551 = vrot.slane %v411, 1
        %vm552 = vcmp.lt.s32.totalorder %v390, 7
        %v553 = vsel %vm552, %v550, %v551
        %v554 = vsel %vm552, %v551, %v550
        %v555 = vsel %vm406, 1, 0
        %v556 = vsel %vm407, 1, 0
        %vm557 = vcmp.eq.s32.totalorder %v555, 1
        %vm558 = vcmp.eq.s32.totalorder %v556, 1
        %v559 = vsel %vm557, %v553, 0.0
        %v560 = vsel %vm558, %v554, 0.0
        %v561 = vpack.c.bf16 %v560, %v559
        %s562 = scalar_lea.vmem %s1, 32
        %v563 = vld [vmem:[%s562] sm:$0xf]
        %v564 = vld [vmem:[%s562 + $0x4] sm:$0xf]
        %v565 = vld [vmem:[%s562 + $0x8] sm:$0xf]
        %v566 = vld [vmem:[%s562 + $0xc] sm:$0xf]
        %v571 = vunpack.c.l.b16 %v563
        %v572 = vunpack.c.l.b16 %v564
        %v573 = vunpack.c.l.b16 %v565
        %v574 = vunpack.c.l.b16 %v566
        %v575 = vpack.c.b16 %v572, %v571
        %v576 = vpack.c.b16 %v574, %v573
        %v580 = vsel %vm449, %v561, 0
        %582 = vmatprep.subr.bf16.mxu0 0
        %583 = vmatpush1.bf16.msra.mxu0 %v575
        %584 = vmatprep.subr.bf16.mxu0 0
        %585 = vmatpush1.bf16.msra.mxu0 %v576
        %586 = vmatprep.subr.bf16.mxu0 0
        %587 = vmatpush1.bf16.msra.mxu0 0
        %588 = vmatprep.subr.bf16.mxu0 0
        %589 = vmatpush1.bf16.msra.mxu0 0
        %590 = vmatprep.subr.bf16.mxu0 0
        %591 = vmatpush1.bf16.msra.mxu0 0
        %592 = vmatprep.subr.bf16.mxu0 0
        %593 = vmatpush1.bf16.msra.mxu0 0
        %594 = vmatprep.subr.bf16.mxu0 0
        %595 = vmatpush1.bf16.msra.mxu0 0
        %596 = vmatprep.subr.bf16.mxu0 0
        %597 = vmatpush1.bf16.msra.mxu0 0
        %598 = vmatprep.subr.bf16.mxu0 0
        %599 = vmatpush1.bf16.msra.mxu0 0
        %600 = vmatprep.subr.bf16.mxu0 0
        %601 = vmatpush1.bf16.msra.mxu0 0
        %602 = vmatprep.subr.bf16.mxu0 0
        %603 = vmatpush1.bf16.msra.mxu0 0
        %604 = vmatprep.subr.bf16.mxu0 0
        %605 = vmatpush1.bf16.msra.mxu0 0
        %606 = vmatprep.subr.bf16.mxu0 0
        %607 = vmatpush1.bf16.msra.mxu0 0
        %608 = vmatprep.subr.bf16.mxu0 0
        %609 = vmatpush1.bf16.msra.mxu0 0
        %610 = vmatprep.subr.bf16.mxu0 0
        %611 = vmatpush1.bf16.msra.mxu0 0
        %612 = vmatprep.subr.bf16.mxu0 0
        %613 = vmatpush1.bf16.msra.mxu0 0
        %614 = vmatprep.mubr.bf16.mxu0 0
        %615 = vmatmul.mubr.bf16.gmra.mrb[0].mxu0 %v580
        %v616 = vpop.f32.mrb[0].mxu0
        %v617 = vadd.f32 0.0, %v616
        %v618 = vpop.f32.mrb[0].mxu0
        %v619 = vpop.f32.mrb[0].mxu0
        %v620 = vadd.f32 0.0, %v619
        %v621 = vpop.f32.mrb[0].mxu0
        %622 = vdwg.mxu0
        %v623 = vadd.f32 %v544, %v617
        %v624 = vadd.f32 %v547, %v620
        %v625 = vld [vmem:[%s2] sm:$0x1]
        %v627 = vlaneseq
        %v628 = vshrl.u32 %v627, 7
        %v629 = vsub.s32 0, %v628
        %v630 = vrot.slane %v625, %v629
        %v632 = vadd.f32 %v623, %v630
        %v633 = vadd.f32 %v624, %v630
        %v634 = vmax.f32 %v632, 0.0
        %v635 = vmax.f32 %v633, 0.0
        %vm636 = vcmask 130048
        %v637 = vsel %vm636, %v634, 0.0
        %638 = vadd.xlane.f32.xlu0 %v637
        %v639 = vpop.xlane.xlu0 %638
        %v640 = vsel %vm636, %v635, 0.0
        %641 = vadd.xlane.f32.xlu0 %v640
        %v642 = vpop.xlane.xlu0 %641
        %v643 = vmul.f32 %v639, 0.0625
        %v644 = vmul.f32 %v642, 0.0625
        %v645 = vmul.f32 %v634, %v634
        %v646 = vmul.f32 %v635, %v635
        %v647 = vsel %vm636, %v645, 0.0
        %648 = vadd.xlane.f32.xlu0 %v647
        %v649 = vpop.xlane.xlu0 %648
        %v650 = vsel %vm636, %v646, 0.0
        %651 = vadd.xlane.f32.xlu0 %v650
        %v652 = vpop.xlane.xlu0 %651
        %v653 = vmul.f32 %v649, 0.0625
        %v654 = vmul.f32 %v652, 0.0625
        %v655 = vmul.f32 %v643, %v643
        %v656 = vmul.f32 %v644, %v644
        %v657 = vsub.f32 %v653, %v655
        %v658 = vsub.f32 %v654, %v656
        %v659 = vmax.f32 %v657, 0.0
        %v660 = vmax.f32 %v658, 0.0
        %v661 = vsub.f32 %v634, %v643
        %v662 = vsub.f32 %v635, %v644
        %v663 = vadd.f32 %v659, 1e-05
        %v664 = vadd.f32 %v660, 1e-05
        %v665 = vrsqrt.pop %v663
        %v666 = vrsqrt.pop %v664
        %v667 = vmul.f32 %v661, %v665
        %v668 = vmul.f32 %v662, %v666
        %v669 = vld [vmem:[%s3] sm:$0x1]
        %v671 = vlaneseq
        %v672 = vshrl.u32 %v671, 7
        %v673 = vsub.s32 0, %v672
        %v674 = vrot.slane %v669, %v673
        %v676 = vmul.f32 %v667, %v674
        %v677 = vmul.f32 %v668, %v674
        %v678 = vld [vmem:[%s4] sm:$0x1]
        %v680 = vlaneseq
        %v681 = vshrl.u32 %v680, 7
        %v682 = vsub.s32 0, %v681
        %v683 = vrot.slane %v678, %v682
        %v685 = vadd.f32 %v676, %v683
        %v686 = vadd.f32 %v677, %v683
        %v687 = vrot.slane %v685, 7
        %v688 = vrot.slane %v686, 7
        %v689 = vsel %vm394, %v687, %v688
        %v690 = vsel %vm394, %v688, %v687
        %v691 = vsel %vm418, %v690, 0.0
        %v692 = vsel %vm419, %v689, 0.0
        %v693 = vpack.c.bf16 %v692, %v691
        %v694 = vld [vmem:[%s5] sm:$0xf]
        %v695 = vld [vmem:[%s5 + $0x4] sm:$0xf]
        %v696 = vpack.c.bf16 %v686, %v685
        %s697 = scalar_lea.vmem %s5, 8
        %v698 = vld [vmem:[%s697] sm:$0xf]
        %v699 = vld [vmem:[%s697 + $0x4] sm:$0xf]
        %v702 = vunpack.c.l.b16 %v698
        %v703 = vunpack.c.l.b16 %v699
        %v704 = vpack.c.b16 %v703, %v702
        %v707 = vsel %vm636, %v696, 0
        %709 = vmatprep.subr.bf16.mxu0 0
        %710 = vmatpush1.bf16.msra.mxu0 %v704
        %711 = vmatprep.subr.bf16.mxu0 0
        %712 = vmatpush1.bf16.msra.mxu0 0
        %713 = vmatprep.subr.bf16.mxu0 0
        %714 = vmatpush1.bf16.msra.mxu0 0
        %715 = vmatprep.subr.bf16.mxu0 0
        %716 = vmatpush1.bf16.msra.mxu0 0
        %717 = vmatprep.subr.bf16.mxu0 0
        %718 = vmatpush1.bf16.msra.mxu0 0
        %719 = vmatprep.subr.bf16.mxu0 0
        %720 = vmatpush1.bf16.msra.mxu0 0
        %721 = vmatprep.subr.bf16.mxu0 0
        %722 = vmatpush1.bf16.msra.mxu0 0
        %723 = vmatprep.subr.bf16.mxu0 0
        %724 = vmatpush1.bf16.msra.mxu0 0
        %725 = vmatprep.subr.bf16.mxu0 0
        %726 = vmatpush1.bf16.msra.mxu0 0
        %727 = vmatprep.subr.bf16.mxu0 0
        %728 = vmatpush1.bf16.msra.mxu0 0
        %729 = vmatprep.subr.bf16.mxu0 0
        %730 = vmatpush1.bf16.msra.mxu0 0
        %731 = vmatprep.subr.bf16.mxu0 0
        %732 = vmatpush1.bf16.msra.mxu0 0
        %733 = vmatprep.subr.bf16.mxu0 0
        %734 = vmatpush1.bf16.msra.mxu0 0
        %735 = vmatprep.subr.bf16.mxu0 0
        %736 = vmatpush1.bf16.msra.mxu0 0
        %737 = vmatprep.subr.bf16.mxu0 0
        %738 = vmatpush1.bf16.msra.mxu0 0
        %739 = vmatprep.subr.bf16.mxu0 0
        %740 = vmatpush1.bf16.msra.mxu0 0
        %741 = vmatprep.mubr.bf16.mxu0 0
        %742 = vmatmul.mubr.bf16.gmra.mrb[0].mxu0 %v707
        %v743 = vpop.f32.mrb[0].mxu0
        %v744 = vadd.f32 0.0, %v743
        %v745 = vpop.f32.mrb[0].mxu0
        %v746 = vpop.f32.mrb[0].mxu0
        %v747 = vadd.f32 0.0, %v746
        %v748 = vpop.f32.mrb[0].mxu0
        %749 = vdwg.mxu0
        %v752 = vunpack.c.l.b16 %v694
        %v753 = vunpack.c.l.b16 %v695
        %v754 = vpack.c.b16 %v753, %v752
        %v757 = vsel %vm636, %v693, 0
        %759 = vmatprep.subr.bf16.mxu0 0
        %760 = vmatpush1.bf16.msra.mxu0 %v754
        %761 = vmatprep.subr.bf16.mxu0 0
        %762 = vmatpush1.bf16.msra.mxu0 0
        %763 = vmatprep.subr.bf16.mxu0 0
        %764 = vmatpush1.bf16.msra.mxu0 0
        %765 = vmatprep.subr.bf16.mxu0 0
        %766 = vmatpush1.bf16.msra.mxu0 0
        %767 = vmatprep.subr.bf16.mxu0 0
        %768 = vmatpush1.bf16.msra.mxu0 0
        %769 = vmatprep.subr.bf16.mxu0 0
        %770 = vmatpush1.bf16.msra.mxu0 0
        %771 = vmatprep.subr.bf16.mxu0 0
        %772 = vmatpush1.bf16.msra.mxu0 0
        %773 = vmatprep.subr.bf16.mxu0 0
        %774 = vmatpush1.bf16.msra.mxu0 0
        %775 = vmatprep.subr.bf16.mxu0 0
        %776 = vmatpush1.bf16.msra.mxu0 0
        %777 = vmatprep.subr.bf16.mxu0 0
        %778 = vmatpush1.bf16.msra.mxu0 0
        %779 = vmatprep.subr.bf16.mxu0 0
        %780 = vmatpush1.bf16.msra.mxu0 0
        %781 = vmatprep.subr.bf16.mxu0 0
        %782 = vmatpush1.bf16.msra.mxu0 0
        %783 = vmatprep.subr.bf16.mxu0 0
        %784 = vmatpush1.bf16.msra.mxu0 0
        %785 = vmatprep.subr.bf16.mxu0 0
        %786 = vmatpush1.bf16.msra.mxu0 0
        %787 = vmatprep.subr.bf16.mxu0 0
        %788 = vmatpush1.bf16.msra.mxu0 0
        %789 = vmatprep.subr.bf16.mxu0 0
        %790 = vmatpush1.bf16.msra.mxu0 0
        %791 = vmatprep.mubr.bf16.mxu0 0
        %792 = vmatmul.mubr.bf16.gmra.mrb[0].mxu0 %v757
        %v793 = vpop.f32.mrb[0].mxu0
        %v794 = vadd.f32 %v744, %v793
        %v795 = vpop.f32.mrb[0].mxu0
        %v796 = vpop.f32.mrb[0].mxu0
        %v797 = vadd.f32 %v747, %v796
        %v798 = vpop.f32.mrb[0].mxu0
        %799 = vdwg.mxu0
        %v800 = vrot.slane %v685, 1
        %v801 = vrot.slane %v686, 1
        %v802 = vsel %vm552, %v800, %v801
        %v803 = vsel %vm552, %v801, %v800
        %v804 = vsel %vm557, %v802, 0.0
        %v805 = vsel %vm558, %v803, 0.0
        %v806 = vpack.c.bf16 %v805, %v804
        %s807 = scalar_lea.vmem %s5, 16
        %v808 = vld [vmem:[%s807] sm:$0xf]
        %v809 = vld [vmem:[%s807 + $0x4] sm:$0xf]
        %v812 = vunpack.c.l.b16 %v808
        %v813 = vunpack.c.l.b16 %v809
        %v814 = vpack.c.b16 %v813, %v812
        %v817 = vsel %vm636, %v806, 0
        %819 = vmatprep.subr.bf16.mxu0 0
        %820 = vmatpush1.bf16.msra.mxu0 %v814
        %821 = vmatprep.subr.bf16.mxu0 0
        %822 = vmatpush1.bf16.msra.mxu0 0
        %823 = vmatprep.subr.bf16.mxu0 0
        %824 = vmatpush1.bf16.msra.mxu0 0
        %825 = vmatprep.subr.bf16.mxu0 0
        %826 = vmatpush1.bf16.msra.mxu0 0
        %827 = vmatprep.subr.bf16.mxu0 0
        %828 = vmatpush1.bf16.msra.mxu0 0
        %829 = vmatprep.subr.bf16.mxu0 0
        %830 = vmatpush1.bf16.msra.mxu0 0
        %831 = vmatprep.subr.bf16.mxu0 0
        %832 = vmatpush1.bf16.msra.mxu0 0
        %833 = vmatprep.subr.bf16.mxu0 0
        %834 = vmatpush1.bf16.msra.mxu0 0
        %835 = vmatprep.subr.bf16.mxu0 0
        %836 = vmatpush1.bf16.msra.mxu0 0
        %837 = vmatprep.subr.bf16.mxu0 0
        %838 = vmatpush1.bf16.msra.mxu0 0
        %839 = vmatprep.subr.bf16.mxu0 0
        %840 = vmatpush1.bf16.msra.mxu0 0
        %841 = vmatprep.subr.bf16.mxu0 0
        %842 = vmatpush1.bf16.msra.mxu0 0
        %843 = vmatprep.subr.bf16.mxu0 0
        %844 = vmatpush1.bf16.msra.mxu0 0
        %845 = vmatprep.subr.bf16.mxu0 0
        %846 = vmatpush1.bf16.msra.mxu0 0
        %847 = vmatprep.subr.bf16.mxu0 0
        %848 = vmatpush1.bf16.msra.mxu0 0
        %849 = vmatprep.subr.bf16.mxu0 0
        %850 = vmatpush1.bf16.msra.mxu0 0
        %851 = vmatprep.mubr.bf16.mxu0 0
        %852 = vmatmul.mubr.bf16.gmra.mrb[0].mxu0 %v817
        %v853 = vpop.f32.mrb[0].mxu0
        %v854 = vadd.f32 0.0, %v853
        %v855 = vpop.f32.mrb[0].mxu0
        %v856 = vpop.f32.mrb[0].mxu0
        %v857 = vadd.f32 0.0, %v856
        %v858 = vpop.f32.mrb[0].mxu0
        %859 = vdwg.mxu0
        %v860 = vadd.f32 %v794, %v854
        %v861 = vadd.f32 %v797, %v857
        %v862 = vld [vmem:[%s6] sm:$0x1]
        %v864 = vlaneseq
        %v865 = vshrl.u32 %v864, 7
        %v866 = vsub.s32 0, %v865
        %v867 = vrot.slane %v862, %v866
        %v869 = vadd.f32 %v860, %v867
        %v870 = vadd.f32 %v861, %v867
        %v871 = vmax.f32 %v869, 0.0
        %v872 = vmax.f32 %v870, 0.0
        %v873 = vsel %vm636, %v871, 0.0
        %874 = vadd.xlane.f32.xlu0 %v873
        %v875 = vpop.xlane.xlu0 %874
        %v876 = vsel %vm636, %v872, 0.0
        %877 = vadd.xlane.f32.xlu0 %v876
        %v878 = vpop.xlane.xlu0 %877
        %v879 = vmul.f32 %v875, 0.0625
        %v880 = vmul.f32 %v878, 0.0625
        %v881 = vmul.f32 %v871, %v871
        %v882 = vmul.f32 %v872, %v872
        %v883 = vsel %vm636, %v881, 0.0
        %884 = vadd.xlane.f32.xlu0 %v883
        %v885 = vpop.xlane.xlu0 %884
        %v886 = vsel %vm636, %v882, 0.0
        %887 = vadd.xlane.f32.xlu0 %v886
        %v888 = vpop.xlane.xlu0 %887
        %v889 = vmul.f32 %v885, 0.0625
        %v890 = vmul.f32 %v888, 0.0625
        %v891 = vmul.f32 %v879, %v879
        %v892 = vmul.f32 %v880, %v880
        %v893 = vsub.f32 %v889, %v891
        %v894 = vsub.f32 %v890, %v892
        %v895 = vmax.f32 %v893, 0.0
        %v896 = vmax.f32 %v894, 0.0
        %v897 = vsub.f32 %v871, %v879
        %v898 = vsub.f32 %v872, %v880
        %v899 = vadd.f32 %v895, 1e-05
        %v900 = vadd.f32 %v896, 1e-05
        %v901 = vrsqrt.pop %v899
        %v902 = vrsqrt.pop %v900
        %v903 = vmul.f32 %v897, %v901
        %v904 = vmul.f32 %v898, %v902
        %v905 = vld [vmem:[%s7] sm:$0x1]
        %v907 = vlaneseq
        %v908 = vshrl.u32 %v907, 7
        %v909 = vsub.s32 0, %v908
        %v910 = vrot.slane %v905, %v909
        %v912 = vmul.f32 %v903, %v910
        %v913 = vmul.f32 %v904, %v910
        %v914 = vld [vmem:[%s8] sm:$0x1]
        %v916 = vlaneseq
        %v917 = vshrl.u32 %v916, 7
        %v918 = vsub.s32 0, %v917
        %v919 = vrot.slane %v914, %v918
        %v921 = vadd.f32 %v912, %v919
        %v922 = vadd.f32 %v913, %v919
        %v923 = vld [vmem:[%s9] sm:$0x1]
        %v924 = vld [vmem:[#allocation2] sm:$0x1]
        %926 = vset.pattern.permute.xlu0 0
        %927 = vperm.xlu0 %926, %v924
        %v928 = vpop.permute.xlu0 %927
        %v930 = vlaneseq
        %v931 = vshrl.u32 %v930, 7
        %v932 = vsub.s32 0, %v931
        %v933 = vrot.slane %v928, %v932
        %v935 = vsel %vm636, %v923, 0
        %v938 = vsel %vm636, %v921, 0
        %v941 = vsel %vm636, %v922, 0
        %943 = vmatprep.subr.mxu0 0.0
        %944 = vmatpush1.xpose.msra.mxu0 %v938
        %945 = vmatprep.subr.mxu0 0.0
        %946 = vmatpush1.xpose.msra.mxu0 %v941
        %947 = vmatprep.subr.mxu0 0.0
        %948 = vmatpush1.xpose.msra.mxu0 0.0
        %949 = vmatprep.subr.mxu0 0.0
        %950 = vmatpush1.xpose.msra.mxu0 0.0
        %951 = vmatprep.subr.mxu0 0.0
        %952 = vmatpush1.xpose.msra.mxu0 0.0
        %953 = vmatprep.subr.mxu0 0.0
        %954 = vmatpush1.xpose.msra.mxu0 0.0
        %955 = vmatprep.subr.mxu0 0.0
        %956 = vmatpush1.xpose.msra.mxu0 0.0
        %957 = vmatprep.subr.mxu0 0.0
        %958 = vmatpush1.xpose.msra.mxu0 0.0
        %959 = vmatprep.subr.mxu0 0.0
        %960 = vmatpush1.xpose.msra.mxu0 0.0
        %961 = vmatprep.subr.mxu0 0.0
        %962 = vmatpush1.xpose.msra.mxu0 0.0
        %963 = vmatprep.subr.mxu0 0.0
        %964 = vmatpush1.xpose.msra.mxu0 0.0
        %965 = vmatprep.subr.mxu0 0.0
        %966 = vmatpush1.xpose.msra.mxu0 0.0
        %967 = vmatprep.subr.mxu0 0.0
        %968 = vmatpush1.xpose.msra.mxu0 0.0
        %969 = vmatprep.subr.mxu0 0.0
        %970 = vmatpush1.xpose.msra.mxu0 0.0
        %971 = vmatprep.subr.mxu0 0.0
        %972 = vmatpush1.xpose.msra.mxu0 0.0
        %973 = vmatprep.subr.mxu0 0.0
        %974 = vmatpush1.xpose.msra.mxu0 0.0
        %975 = vmatprep.subr.mxu0 0.0
        %976 = vmatpush1.xpose.msra.mxu0 0.0
        %977 = vmatprep.subr.mxu0 0.0
        %978 = vmatpush1.xpose.msra.mxu0 0.0
        %979 = vmatprep.subr.mxu0 0.0
        %980 = vmatpush1.xpose.msra.mxu0 0.0
        %981 = vmatprep.subr.mxu0 0.0
        %982 = vmatpush1.xpose.msra.mxu0 0.0
        %983 = vmatprep.subr.mxu0 0.0
        %984 = vmatpush1.xpose.msra.mxu0 0.0
        %985 = vmatprep.subr.mxu0 0.0
        %986 = vmatpush1.xpose.msra.mxu0 0.0
        %987 = vmatprep.subr.mxu0 0.0
        %988 = vmatpush1.xpose.msra.mxu0 0.0
        %989 = vmatprep.subr.mxu0 0.0
        %990 = vmatpush1.xpose.msra.mxu0 0.0
        %991 = vmatprep.subr.mxu0 0.0
        %992 = vmatpush1.xpose.msra.mxu0 0.0
        %993 = vmatprep.subr.mxu0 0.0
        %994 = vmatpush1.xpose.msra.mxu0 0.0
        %995 = vmatprep.subr.mxu0 0.0
        %996 = vmatpush1.xpose.msra.mxu0 0.0
        %997 = vmatprep.subr.mxu0 0.0
        %998 = vmatpush1.xpose.msra.mxu0 0.0
        %999 = vmatprep.subr.mxu0 0.0
        %1000 = vmatpush1.xpose.msra.mxu0 0.0
        %1001 = vmatprep.subr.mxu0 0.0
        %1002 = vmatpush1.xpose.msra.mxu0 0.0
        %1003 = vmatprep.subr.mxu0 0.0
        %1004 = vmatpush1.xpose.msra.mxu0 0.0
        %1005 = vmatprep.subr.mxu0 0.0
        %1006 = vmatpush1.xpose.msra.mxu0 0.0
        %1007 = vmatprep.mubr.f32.mxu0 0.0
        %1008 = vmatmul.mubr.f32.gmra.mrb[0].mxu0 %v935
        %v1009 = vpop.f32.mrb[0].mxu0
        %v1010 = vadd.f32 %v933, %v1009
        %v1011 = vpop.f32.mrb[0].mxu0
        %1012 = vdwg.mxu0
        %v1013 = vmul.f32 %v1010, 1.442695
        %v1014 = vpow.pop %v1013
        %v1015 = vsub.f32 %v1014, 1.0
        %v1016 = vfloor.f32 %v1015
        %v1017 = vsub.f32 %v1015, %v1016
        %v1018 = vmul.f32 %v1016, 0.5
        %v1019 = vfloor.f32 %v1018
        %v1020 = vmul.f32 %v1019, 2.0
        %v1021 = vsub.f32 %v1016, %v1020
        %vm1022 = vcmp.gt.f32.partialorder %v1021, 0.5
        %vm1023 = vcmp.gt.f32.partialorder %v1017, 0.5
        %vm1024 = vcmp.eq.f32.partialorder %v1017, 0.5
        %vm1025 = vmand %vm1024, %vm1022
        %vm1026 = vmor %vm1023, %vm1025
        %v1027 = vsel %vm1026, 1.0, 0.0
        %v1028 = vadd.f32 %v1016, %v1027
        %v1029 = vmax.f32 %v1028, 0.0
        %v1030 = vmin.f32 %v1029, 2.1474835e+09
        %v1031 = vcvt.f32.s32.to.zero.pseudo %v1030
        %vm1032 = vcmask 122880
        %1033 = vst.msk [vmem:[%s381] sm:$0x1] %vm1032, %v1031
        %s1034 = sand.u32 %s271, 1
        %s1035 = scalar_lea.sflag [#allocation4], %s1034
        %s1036 = sand.u32 %s271, 1
        %s1037 = scalar_lea.vmem [#allocation3], %s1036
        // Predicated region
        $region65: #{tpu_custom_call.1} parent=63 // pred_check
          %p1038 = pneg %p281
        $region66: #{tpu_custom_call.1} parent=63 // pred_check_branch
          %1040 = sbr.rel (%p1038) target = $region68
        $region67: #{tpu_custom_call.1} parent=63 // pred_region
          %s1042 = ssub.s32 16, 16
          %1043 = vsyncadd %s1035, %s1042
          %s1044 = smul.addr %s27, 16
          %s1045 = scalar_lea.hbm %s11, %s1044
          %s1047 = sshll.u32 %s1037, 4
          %s1048 = int_to_ptr.vmem [resolvable:$true] %s1047
          %1050 = dma.vmem_to_hbm [thread:$0]  %s1048, 16, %s1045, %s1035
        $region68: #{tpu_custom_call.1} parent=63 // pred_fallthru
          _
      $region64: #{tpu_custom_call.1} parent=5 // pred_fallthru
        _
      %p1051 = scmp.le.s32.totalorder 2, %s22
      // Predicated region
      $region69: #{tpu_custom_call.1} parent=5 // pred_check
        %p1052 = pneg %p1051
      $region70: #{tpu_custom_call.1} parent=5 // pred_check_branch
        %1054 = sbr.rel (%p1052) target = $region72
      $region71: #{tpu_custom_call.1} parent=5 // pred_region
        %s1055 = ssub.s32 %s22, 2
        // Predicated region
        $region73: #{tpu_custom_call.1} parent=71 // pred_check
          %p1056 = pneg %p287
        $region74: #{tpu_custom_call.1} parent=71 // pred_check_branch
          %1058 = sbr.rel (%p1056) target = $region76
        $region75: #{tpu_custom_call.1} parent=71 // pred_region
          %s1059 = sand.u32 %s272, 1
          %s1060 = scalar_lea.sflag [#allocation4], %s1059
          %s1061 = sand.u32 %s272, 1
          %s1062 = scalar_lea.vmem [#allocation3], %s1061
          %1063 = dma.done %s1060, 16
        $region76: #{tpu_custom_call.1} parent=71 // pred_fallthru
          _
      $region72: #{tpu_custom_call.1} parent=5 // pred_fallthru
        _
    $region6: #{tpu_custom_call.1} parent=1 // loop_footer
      %s26 = sadd.s32 1, %s22
    $region7: #{tpu_custom_call.1} parent=1 // loop_footer_branch
      %21 = sbr.rel target = $region3
    $region8: #{tpu_custom_call.1} parent=1 // loop_exit
      _
    %1064 = vsyncpa [#allocation4], 1
    %s1065 = scalar_lea.sflag [#allocation4], 1
    %1066 = vsyncpa %s1065, 1

</llo_original>
